<compile_context>
chip_gen: v7x
topology: tpu7x:2x2x1
jax: 0.10.0
libtpu: 0.0.40
codegen_flags: <defaults>
</compile_context>

<pallas_src>
import jax
import jax.numpy as jnp
from jax.experimental import pallas as pl
from jax.experimental.pallas import tpu as pltpu

EPS_BN = 1e-5


# ----------------------------------------------------------------------------
# helpers
# ----------------------------------------------------------------------------
def _pick_tm(M, target=512):
    """Largest divisor of M that is a multiple of 8 and <= target (else M)."""
    best = M
    c = 8
    while c <= min(M, target):
        if M % c == 0:
            best = c
        c += 8
    if M % best != 0:
        best = M
    return best


def _lane_width(total, nf):
    """Largest multiple of nf that is <= 128 and divides `total`."""
    lw = (128 // nf) * nf
    while lw >= nf:
        if total % lw == 0:
            return lw
        lw -= nf
    return nf


# ----------------------------------------------------------------------------
# parameter preprocessing (trace-time, tiny; could be cached per module)
# ----------------------------------------------------------------------------
def _build_shuf_blockdiag(w_shuf, b_shuf, W, ni, nf):
    """Block-diagonal 1x1-conv + pixel-shuffle weights.

    rows_i = relu(X_flat @ Wbd[i] + brow[i]) gives, for row-parity i, the rows
    2h+i of the upsampled image in flattened (x, c) lane layout:
      Wbd[i][w*ni + k, x*nf + c] = w_shuf[k, 4c + 2i + (x % 2)]  if x // 2 == w else 0
    """
    Kx, L = W * ni, 2 * W * nf
    r = jnp.arange(Kx)
    w_of_r, k_of_r = r // ni, r % ni
    c_ = jnp.arange(L)
    x_of_c, ch_of_c = c_ // nf, c_ % nf
    j_of_c, wcol_of_c = x_of_c % 2, x_of_c // 2
    mats, rows = [], []
    for i in range(2):
        src_col = 4 * ch_of_c + 2 * i + j_of_c
        dense = w_shuf[k_of_r[:, None], src_col[None, :]]
        mask = (w_of_r[:, None] == wcol_of_c[None, :]).astype(jnp.float32)
        mats.append(dense * mask)
        rows.append(b_shuf[src_col])
    return jnp.stack(mats, 0), jnp.stack(rows, 0)[:, None, :]   # (2,Kx,L), (2,1,L)


def _build_conv_bands(w_conv, nf, Wout):
    """Banded 5x5-conv weights over the flattened (x, cin)/(x, cout) lane axis.

    Band[dy][u*nf + ci, x*nf + co] = w5[dy, u - x + 2, ci, co] when 0 <= u-x+2 < 5,
    else 0 (which also absorbs the horizontal zero padding of 2).
    """
    w5 = w_conv.reshape(5, 5, nf, nf)                  # (dy, dx, cin, cout)
    u = jnp.arange(Wout)
    du = u[:, None] - u[None, :] + 2                   # (u, x)
    valid = ((du >= 0) & (du <= 4)).astype(jnp.float32)
    duc = jnp.clip(du, 0, 4)
    band = w5[:, duc]                                  # (5, Wout, Wout, nf, nf)
    band = band * valid[None, :, :, None, None]
    band = jnp.transpose(band, (0, 1, 3, 2, 4)).reshape(5, Wout * nf, Wout * nf)
    return band


# ----------------------------------------------------------------------------
# Kernel 1: per-lane sum / sum-of-squares with resident accumulator
# (used for BatchNorm batch statistics of `body`)
# ----------------------------------------------------------------------------
def _colstats_kernel(x_ref, s_ref, q_ref):
    @pl.when(pl.program_id(0) == 0)
    def _init():
        s_ref[...] = jnp.zeros_like(s_ref)
        q_ref[...] = jnp.zeros_like(q_ref)

    x = x_ref[...]
    s_ref[...] += jnp.sum(x, axis=0, keepdims=True)
    q_ref[...] += jnp.sum(x * x, axis=0, keepdims=True)


def column_stats(x2d):
    M, LW = x2d.shape
    tm = _pick_tm(M)
    return pl.pallas_call(
        _colstats_kernel,
        out_shape=(jax.ShapeDtypeStruct((1, LW), jnp.float32),
                   jax.ShapeDtypeStruct((1, LW), jnp.float32)),
        grid=(M // tm,),
        in_specs=[pl.BlockSpec((tm, LW), lambda i: (i, 0))],
        out_specs=(pl.BlockSpec((1, LW), lambda i: (0, 0)),
                   pl.BlockSpec((1, LW), lambda i: (0, 0))),
        compiler_params=pltpu.CompilerParams(dimension_semantics=("arbitrary",)),
    )(x2d)


# ----------------------------------------------------------------------------
# Kernel 2: fused UpBlock main pipeline (per image):
#   1x1 conv + ReLU + pixel shuffle  ->  skip-add + BN(body) + ReLU
#   -> in-kernel vertical zero pad (VMEM slab) -> 5x5 conv (banded matmuls)
#   -> pre-BN conv output + fused per-image channel sum / sumsq
# ----------------------------------------------------------------------------
def _upblock_main_kernel(xf_ref, body_ref, wbd_ref, bsh_ref, sc_ref, sh_ref,
                         wband_ref, bc_ref,
                         out_ref, cs_ref, cq_ref,
                         epad_ref, opad_ref):
    H = xf_ref.shape[1]
    L = sc_ref.shape[1]
    x = xf_ref[0]                                        # (H, W*ni)
    zero_row = jnp.zeros((1, L), jnp.float32)
    slabs = (epad_ref, opad_ref)

    # --- 1x1 conv + ReLU + pixel shuffle + skip-add + BN + ReLU, per row parity ---
    for i in range(2):                                   # static unroll
        rows = jnp.dot(x, wbd_ref[i], preferred_element_type=jnp.float32) + bsh_ref[i]
        rows = jnp.maximum(rows, 0.0)                    # ReLU of the 1x1 conv
        skip = body_ref[0, i]                            # (H, L)
        up = jnp.maximum(rows + skip * sc_ref[...] + sh_ref[...], 0.0)
        slab = slabs[i]
        slab[pl.ds(0, 1), :] = zero_row                  # vertical zero padding (top)
        slab[pl.ds(1, H), :] = up
        slab[pl.ds(H + 1, 1), :] = zero_row              # vertical zero padding (bottom)

    # --- 5x5 conv as a polyphase (even/odd output rows) banded contraction ---
    e = epad_ref[...]                                    # (H+2, L)
    o = opad_ref[...]
    bias = bc_ref[...]                                   # (1, L)
    b0, b1, b2, b3, b4 = (wband_ref[0], wband_ref[1], wband_ref[2],
                          wband_ref[3], wband_ref[4])

    def mm(a, b):
        return jnp.dot(a, b, preferred_element_type=jnp.float32)

    conv_even = (mm(e[0:H], b0) + mm(o[0:H], b1) + mm(e[1:H + 1], b2)
                 + mm(o[1:H + 1], b3) + mm(e[2:H + 2], b4) + bias)
    conv_odd = (mm(o[0:H], b0) + mm(e[1:H + 1], b1) + mm(o[1:H + 1], b2)
                + mm(e[2:H + 2], b3) + mm(o[2:H + 2], b4) + bias)

    out_ref[0, 0] = conv_even
    out_ref[0, 1] = conv_odd

    # --- fused BN statistics (per-image partial sums over rows) ---
    cs_ref[0] = (jnp.sum(conv_even, axis=0, keepdims=True)
                 + jnp.sum(conv_odd, axis=0, keepdims=True))
    cq_ref[0] = (jnp.sum(conv_even * conv_even, axis=0, keepdims=True)
                 + jnp.sum(conv_odd * conv_odd, axis=0, keepdims=True))


def upblock_main(xflat, body_sep, wbd, brow, scale_row, shift_row, bands, bconv_row):
    N, H, Kx = xflat.shape
    L = scale_row.shape[1]
    out_shape = (jax.ShapeDtypeStruct((N, 2, H, L), jnp.float32),
                 jax.ShapeDtypeStruct((N, 1, L), jnp.float32),
                 jax.ShapeDtypeStruct((N, 1, L), jnp.float32))
    return pl.pallas_call(
        _upblock_main_kernel,
        out_shape=out_shape,
        grid=(N,),
        in_specs=[
            pl.BlockSpec((1, H, Kx), lambda n: (n, 0, 0)),
            pl.BlockSpec((1, 2, H, L), lambda n: (n, 0, 0, 0)),
            pl.BlockSpec((2, Kx, L), lambda n: (0, 0, 0)),
            pl.BlockSpec((2, 1, L), lambda n: (0, 0, 0)),
            pl.BlockSpec((1, L), lambda n: (0, 0)),
            pl.BlockSpec((1, L), lambda n: (0, 0)),
            pl.BlockSpec((5, L, L), lambda n: (0, 0, 0)),
            pl.BlockSpec((1, L), lambda n: (0, 0)),
        ],
        out_specs=(
            pl.BlockSpec((1, 2, H, L), lambda n: (n, 0, 0, 0)),
            pl.BlockSpec((1, 1, L), lambda n: (n, 0, 0)),
            pl.BlockSpec((1, 1, L), lambda n: (n, 0, 0)),
        ),
        scratch_shapes=[pltpu.VMEM((H + 2, L), jnp.float32),
                        pltpu.VMEM((H + 2, L), jnp.float32)],
        compiler_params=pltpu.CompilerParams(dimension_semantics=("parallel",)),
    )(xflat, body_sep, wbd, brow, scale_row, shift_row, bands, bconv_row)


# ----------------------------------------------------------------------------
# Kernel 3: BN affine + ReLU on a lane-dense (M, 128) view (no zeros-add input)
# ----------------------------------------------------------------------------
def _affine_relu_kernel(x_ref, sc_ref, sh_ref, o_ref):
    o_ref[...] = jnp.maximum(x_ref[...] * sc_ref[...] + sh_ref[...], 0.0)


def affine_relu(x2d, scale_row, shift_row):
    M, LW = x2d.shape
    tm = _pick_tm(M)
    return pl.pallas_call(
        _affine_relu_kernel,
        out_shape=jax.ShapeDtypeStruct((M, LW), jnp.float32),
        grid=(M // tm,),
        in_specs=[pl.BlockSpec((tm, LW), lambda i: (i, 0)),
                  pl.BlockSpec((1, LW), lambda i: (0, 0)),
                  pl.BlockSpec((1, LW), lambda i: (0, 0))],
        out_specs=pl.BlockSpec((tm, LW), lambda i: (i, 0)),
        compiler_params=pltpu.CompilerParams(dimension_semantics=("parallel",)),
    )(x2d, scale_row, shift_row)


# ----------------------------------------------------------------------------
# UpBlock forward (NCHW in / NCHW out, matching the PyTorch module)
# ----------------------------------------------------------------------------
def _upblock_forward(params, xb_nchw, body_nchw):
    w_shuf = params["w_shuf"].astype(jnp.float32)
    b_shuf = params["b_shuf"].astype(jnp.float32)
    w_conv = params["w_conv"].astype(jnp.float32)
    b_conv = params["b_conv"].astype(jnp.float32)
    ni = w_shuf.shape[0]
    nf = w_conv.shape[-1]
    N, _, H, W = xb_nchw.shape
    Hout, Wout = 2 * H, 2 * W
    L = Wout * nf
    Kx = W * ni

    wbd, brow = _build_shuf_blockdiag(w_shuf, b_shuf, W, ni, nf)
    bands = _build_conv_bands(w_conv, nf, Wout)
    bconv_row = jnp.tile(b_conv, Wout).reshape(1, L)

    # xb -> (N, H, W*ni): lane axis holds the (w, cin) pair.
    xflat = jnp.transpose(xb_nchw.astype(jnp.float32), (0, 2, 3, 1)).reshape(N, H, Kx)

    if body_nchw is None:
        # ReLU(up + 0*body + 0) == up (up is already >= 0 post-ReLU): same math path.
        body_sep = jnp.zeros((N, 2, H, L), jnp.float32)
        scale_row = jnp.zeros((1, L), jnp.float32)
        shift_row = jnp.zeros((1, L), jnp.float32)
    else:
        if body_nchw.shape[-2:] != (Hout, Wout):
            # TODO(synk): the F.interpolate nearest-resize branch for mismatched
            # skip sizes is not implemented in the fused path.
            raise NotImplementedError("body spatial size must be 2x that of xb")
        body = body_nchw.astype(jnp.float32)
        # body -> (N, parity, H, 2W*nf): rows 2h+i split by parity i.
        body_sep = jnp.transpose(body.reshape(N, nf, H, 2, Wout),
                                 (0, 3, 2, 4, 1)).reshape(N, 2, H, L)
        # BatchNorm batch statistics of body (Pallas, lane-dense view).
        total_b = N * 2 * H * L
        lw = _lane_width(total_b, nf)
        bs, bq = column_stats(body_sep.reshape(total_b // lw, lw))
        cnt = N * Hout * Wout
        s_c = bs[0].reshape(lw // nf, nf).sum(axis=0)
        q_c = bq[0].reshape(lw // nf, nf).sum(axis=0)
        mean = s_c / cnt
        var = q_c / cnt - mean * mean
        scale = params["g_bn"].astype(jnp.float32) * jax.lax.rsqrt(var + EPS_BN)
        shift = params["b_bn"].astype(jnp.float32) - mean * scale
        scale_row = jnp.tile(scale, Wout).reshape(1, L)
        shift_row = jnp.tile(shift, Wout).reshape(1, L)

    # Fused main kernel: shuf + skip + pad + 5x5 conv + fused channel stats.
    conv_pre, csum, csq = upblock_main(xflat, body_sep, wbd, brow,
                                       scale_row, shift_row, bands, bconv_row)

    # Conv2dBlock BatchNorm batch statistics from the fused partial sums.
    cnt2 = N * Hout * Wout
    s2 = csum.sum(axis=0)[0].reshape(Wout, nf).sum(axis=0)
    q2 = csq.sum(axis=0)[0].reshape(Wout, nf).sum(axis=0)
    mean2 = s2 / cnt2
    var2 = q2 / cnt2 - mean2 * mean2
    scale2 = params["g_bn2"].astype(jnp.float32) * jax.lax.rsqrt(var2 + EPS_BN)
    shift2 = params["b_bn2"].astype(jnp.float32) - mean2 * scale2

    # Final BN affine + ReLU on a lane-dense view.
    total_o = N * 2 * H * L
    lwo = _lane_width(total_o, nf)
    out_flat = affine_relu(conv_pre.reshape(total_o // lwo, lwo),
                           jnp.tile(scale2, lwo // nf).reshape(1, lwo),
                           jnp.tile(shift2, lwo // nf).reshape(1, lwo))

    # (N, parity, H, Wout, nf) -> NCHW (rows 2h+parity re-interleaved).
    out = out_flat.reshape(N, 2, H, Wout, nf)
    out = jnp.transpose(out, (0, 4, 2, 1, 3)).reshape(N, nf, Hout, Wout)
    return out


upblock_forward = jax.jit(_upblock_forward)

# TODO(synk): BatchNorm running-stat (momentum) bookkeeping is a training-time
# side effect with no influence on this forward output, so it is not modeled.


# ----------------------------------------------------------------------------
# pure-JAX reference (verification only)
# ----------------------------------------------------------------------------
def upblock_reference(params, xb_nchw, body_nchw):
    nf = params["w_conv"].shape[-1]
    x = jnp.transpose(xb_nchw, (0, 2, 3, 1)).astype(jnp.float32)
    y = jnp.maximum(jnp.einsum("nhwc,cd->nhwd", x, params["w_shuf"]) + params["b_shuf"], 0.0)
    N, H, W, _ = y.shape
    y = y.reshape(N, H, W, nf, 2, 2)
    up = jnp.transpose(y, (0, 1, 4, 2, 5, 3)).reshape(N, 2 * H, 2 * W, nf)
    body = jnp.transpose(body_nchw, (0, 2, 3, 1)).astype(jnp.float32)
    mean = body.mean(axis=(0, 1, 2)); var = body.var(axis=(0, 1, 2))
    bn = (body - mean) * jax.lax.rsqrt(var + EPS_BN) * params["g_bn"] + params["b_bn"]
    up = jnp.maximum(up + bn, 0.0)
    xp = jnp.pad(up, ((0, 0), (2, 2), (2, 2), (0, 0)))
    w = params["w_conv"].reshape(5, 5, nf, nf)
    yc = jax.lax.conv_general_dilated(
        xp, w, (1, 1), "VALID", dimension_numbers=("NHWC", "HWIO", "NHWC")
    ) + params["b_conv"]
    m2 = yc.mean(axis=(0, 1, 2)); v2 = yc.var(axis=(0, 1, 2))
    out = jnp.maximum((yc - m2) * jax.lax.rsqrt(v2 + EPS_BN) * params["g_bn2"] + params["b_bn2"], 0.0)
    return jnp.transpose(out, (0, 3, 1, 2))


# ----------------------------------------------------------------------------
if __name__ == "__main__":
    # UpBlock(ni=8, nf=4);  xb: (2, 8, 8, 8) NCHW,  body: (2, 4, 16, 16) NCHW
    ni, nf = 8, 4
    N, H, W = 2, 8, 8

    key = jax.random.PRNGKey(0)
    ks = jax.random.split(key, 10)
    params = {
        # PixelShuffle_ICNR 1x1 conv: ni -> 4*nf  (stored as (ni, 4*nf) for x @ w)
        "w_shuf": jax.random.normal(ks[0], (ni, 4 * nf), jnp.float32) * 0.1,
        "b_shuf": jax.random.normal(ks[1], (4 * nf,), jnp.float32) * 0.1,
        # BatchNorm2d(nf) applied to `body`
        "g_bn": jax.random.uniform(ks[2], (nf,), jnp.float32, 0.5, 1.5),
        "b_bn": jax.random.normal(ks[3], (nf,), jnp.float32) * 0.1,
        # Conv2dBlock 5x5 conv: (25, Cin, Cout) with tap index k = dy*5 + dx
        "w_conv": jax.random.normal(ks[4], (25, nf, nf), jnp.float32) * 0.05,
        "b_conv": jax.random.normal(ks[5], (nf,), jnp.float32) * 0.1,
        # Conv2dBlock BatchNorm2d(nf)
        "g_bn2": jax.random.uniform(ks[6], (nf,), jnp.float32, 0.5, 1.5),
        "b_bn2": jax.random.normal(ks[7], (nf,), jnp.float32) * 0.1,
    }

    xb = jax.random.normal(ks[8], (N, ni, H, W), jnp.float32)
    body = jax.random.normal(ks[9], (N, nf, 2 * H, 2 * W), jnp.float32)

    out = jax.block_until_ready(upblock_forward(params, xb, body))
    ref = jax.block_until_ready(upblock_reference(params, xb, body))

    assert out.shape == (N, nf, 2 * H, 2 * W), out.shape
    assert bool(jnp.all(jnp.isfinite(out)))
    err = float(jnp.max(jnp.abs(out - ref)))
    assert jnp.allclose(out, ref, atol=1e-3, rtol=1e-3), err
    print("KERNEL_OK")
</pallas_src>

<mosaic_0001>
module attributes {stable_mosaic.version = 11 : i64} {
  func.func @_colstats_kernel(%arg0: i32, %arg1: memref<16x128xf32, #tpu.memory_space<vmem>>, %arg2: memref<1x128xf32, #tpu.memory_space<vmem>>, %arg3: memref<1x128xf32, #tpu.memory_space<vmem>>) attributes {dimension_semantics = [#tpu.dimension_semantics<arbitrary>], iteration_bounds = array<i64: 1>, scalar_prefetch = 0 : i64, scratch_operands = 0 : i64, tpu.core_type = #tpu.core_type<tc>, window_params = [{transform_indices = @transform_0, window_bounds = array<i64: 16, 128>}, {pipeline_mode = #tpu.pipeline_mode<synchronous>, transform_indices = @transform_1, window_bounds = array<i64: 1, 128>}, {pipeline_mode = #tpu.pipeline_mode<synchronous>, transform_indices = @transform_2, window_bounds = array<i64: 1, 128>}]} {
    %c0_i32 = arith.constant 0 : i32
    %0 = arith.cmpi eq, %arg0, %c0_i32 : i32
    %1 = arith.extui %0 : i1 to i32
    %c0_i32_0 = arith.constant 0 : i32
    %2 = arith.cmpi ne, %1, %c0_i32_0 : i32
    scf.if %2 {
      %cst_11 = arith.constant 0.000000e+00 : f32
      %15 = vector.broadcast %cst_11 : f32 to vector<1x128xf32>
      %c0_12 = arith.constant 0 : index
      %c0_13 = arith.constant 0 : index
      %16 = vector.load %arg2[%c0_12, %c0_13] : memref<1x128xf32, #tpu.memory_space<vmem>>, vector<1x128xf32>
      tpu.vector_store %arg2[%c0_12, %c0_13], %15 {strides = array<i32>} : memref<1x128xf32, #tpu.memory_space<vmem>>, vector<1x128xf32>,
      %cst_14 = arith.constant 0.000000e+00 : f32
      %17 = vector.broadcast %cst_14 : f32 to vector<1x128xf32>
      %c0_15 = arith.constant 0 : index
      %c0_16 = arith.constant 0 : index
      %18 = vector.load %arg3[%c0_15, %c0_16] : memref<1x128xf32, #tpu.memory_space<vmem>>, vector<1x128xf32>
      tpu.vector_store %arg3[%c0_15, %c0_16], %17 {strides = array<i32>} : memref<1x128xf32, #tpu.memory_space<vmem>>, vector<1x128xf32>,
    } else {
    }
    %c0 = arith.constant 0 : index
    %c0_1 = arith.constant 0 : index
    %3 = vector.load %arg1[%c0, %c0_1] : memref<16x128xf32, #tpu.memory_space<vmem>>, vector<16x128xf32>
    %c0_2 = arith.constant 0 : index
    %c0_3 = arith.constant 0 : index
    %4 = vector.load %arg2[%c0_2, %c0_3] : memref<1x128xf32, #tpu.memory_space<vmem>>, vector<1x128xf32>
    %cst = arith.constant dense<0.000000e+00> : vector<128xf32>
    %5 = vector.multi_reduction <add>, %3, %cst [0] : vector<16x128xf32> to vector<128xf32>
    %6 = vector.shape_cast %5 : vector<128xf32> to vector<1x128xf32>
    %7 = arith.addf %4, %6 : vector<1x128xf32>
    %c0_4 = arith.constant 0 : index
    %c0_5 = arith.constant 0 : index
    %8 = vector.load %arg2[%c0_4, %c0_5] : memref<1x128xf32, #tpu.memory_space<vmem>>, vector<1x128xf32>
    tpu.vector_store %arg2[%c0_4, %c0_5], %7 {strides = array<i32>} : memref<1x128xf32, #tpu.memory_space<vmem>>, vector<1x128xf32>,
    %c0_6 = arith.constant 0 : index
    %c0_7 = arith.constant 0 : index
    %9 = vector.load %arg3[%c0_6, %c0_7] : memref<1x128xf32, #tpu.memory_space<vmem>>, vector<1x128xf32>
    %10 = arith.mulf %3, %3 : vector<16x128xf32>
    %cst_8 = arith.constant dense<0.000000e+00> : vector<128xf32>
    %11 = vector.multi_reduction <add>, %10, %cst_8 [0] : vector<16x128xf32> to vector<128xf32>
    %12 = vector.shape_cast %11 : vector<128xf32> to vector<1x128xf32>
    %13 = arith.addf %9, %12 : vector<1x128xf32>
    %c0_9 = arith.constant 0 : index
    %c0_10 = arith.constant 0 : index
    %14 = vector.load %arg3[%c0_9, %c0_10] : memref<1x128xf32, #tpu.memory_space<vmem>>, vector<1x128xf32>
    tpu.vector_store %arg3[%c0_9, %c0_10], %13 {strides = array<i32>} : memref<1x128xf32, #tpu.memory_space<vmem>>, vector<1x128xf32>,
    return
  }
  func.func @transform_0(%arg0: i32) -> (i32, i32) {
    %c0_i32 = arith.constant 0 : i32
    %c0_i32_0 = arith.constant 0 : i32
    return %arg0, %c0_i32 : i32, i32
  }
  func.func @transform_1(%arg0: i32) -> (i32, i32) {
    %c0_i32 = arith.constant 0 : i32
    %c0_i32_0 = arith.constant 0 : i32
    %c0_i32_1 = arith.constant 0 : i32
    return %c0_i32, %c0_i32_0 : i32, i32
  }
  func.func @transform_2(%arg0: i32) -> (i32, i32) {
    %c0_i32 = arith.constant 0 : i32
    %c0_i32_0 = arith.constant 0 : i32
    %c0_i32_1 = arith.constant 0 : i32
    return %c0_i32, %c0_i32_0 : i32, i32
  }
}

module attributes {stable_mosaic.version = 11 : i64} {
  func.func @_upblock_main_kernel(%arg0: i32, %arg1: memref<1x8x64xf32, #tpu.memory_space<vmem>>, %arg2: memref<1x2x8x64xf32, #tpu.memory_space<vmem>>, %arg3: memref<2x64x64xf32, #tpu.memory_space<vmem>>, %arg4: memref<2x1x64xf32, #tpu.memory_space<vmem>>, %arg5: memref<1x64xf32, #tpu.memory_space<vmem>>, %arg6: memref<1x64xf32, #tpu.memory_space<vmem>>, %arg7: memref<5x64x64xf32, #tpu.memory_space<vmem>>, %arg8: memref<1x64xf32, #tpu.memory_space<vmem>>, %arg9: memref<1x2x8x64xf32, #tpu.memory_space<vmem>>, %arg10: memref<1x1x64xf32, #tpu.memory_space<vmem>>, %arg11: memref<1x1x64xf32, #tpu.memory_space<vmem>>, %arg12: memref<10x64xf32, #tpu.memory_space<vmem>>, %arg13: memref<10x64xf32, #tpu.memory_space<vmem>>) attributes {dimension_semantics = [#tpu.dimension_semantics<parallel>], iteration_bounds = array<i64: 2>, scalar_prefetch = 0 : i64, scratch_operands = 2 : i64, tpu.core_type = #tpu.core_type<tc>, window_params = [{transform_indices = @transform_0, window_bounds = array<i64: 1, 8, 64>}, {transform_indices = @transform_1, window_bounds = array<i64: 1, 2, 8, 64>}, {pipeline_mode = #tpu.pipeline_mode<synchronous>, transform_indices = @transform_2, window_bounds = array<i64: 2, 64, 64>}, {pipeline_mode = #tpu.pipeline_mode<synchronous>, transform_indices = @transform_3, window_bounds = array<i64: 2, 1, 64>}, {pipeline_mode = #tpu.pipeline_mode<synchronous>, transform_indices = @transform_4, window_bounds = array<i64: 1, 64>}, {pipeline_mode = #tpu.pipeline_mode<synchronous>, transform_indices = @transform_5, window_bounds = array<i64: 1, 64>}, {pipeline_mode = #tpu.pipeline_mode<synchronous>, transform_indices = @transform_6, window_bounds = array<i64: 5, 64, 64>}, {pipeline_mode = #tpu.pipeline_mode<synchronous>, transform_indices = @transform_7, window_bounds = array<i64: 1, 64>}, {transform_indices = @transform_8, window_bounds = array<i64: 1, 2, 8, 64>}, {transform_indices = @transform_9, window_bounds = array<i64: 1, 1, 64>}, {transform_indices = @transform_10, window_bounds = array<i64: 1, 1, 64>}]} {
    %c0 = arith.constant 0 : index
    %c0_0 = arith.constant 0 : index
    %c0_1 = arith.constant 0 : index
    %0 = vector.load %arg1[%c0, %c0_0, %c0_1] : memref<1x8x64xf32, #tpu.memory_space<vmem>>, vector<1x8x64xf32>
    %1 = vector.shape_cast %0 : vector<1x8x64xf32> to vector<8x64xf32>
    %cst = arith.constant 0.000000e+00 : f32
    %2 = vector.broadcast %cst : f32 to vector<1x64xf32>
    %c0_2 = arith.constant 0 : index
    %c0_3 = arith.constant 0 : index
    %c0_4 = arith.constant 0 : index
    %3 = vector.load %arg3[%c0_2, %c0_3, %c0_4] : memref<2x64x64xf32, #tpu.memory_space<vmem>>, vector<1x64x64xf32>
    %4 = vector.shape_cast %3 : vector<1x64x64xf32> to vector<64x64xf32>
    %cst_5 = arith.constant dense<0.000000e+00> : vector<8x64xf32>
    %5 = tpu.matmul %1, %4, %cst_5 {dimension_numbers = #tpu.dot_dimension_numbers<[1], [0], [0], [1], [0, 0, 1, 1], [], []>} : vector<8x64xf32>, vector<64x64xf32>, vector<8x64xf32> -> vector<8x64xf32>
    %c0_6 = arith.constant 0 : index
    %c0_7 = arith.constant 0 : index
    %c0_8 = arith.constant 0 : index
    %6 = vector.load %arg4[%c0_6, %c0_7, %c0_8] : memref<2x1x64xf32, #tpu.memory_space<vmem>>, vector<1x1x64xf32>
    %7 = vector.shape_cast %6 : vector<1x1x64xf32> to vector<1x64xf32>
    %8 = vector.broadcast %7 : vector<1x64xf32> to vector<8x64xf32>
    %9 = arith.addf %5, %8 : vector<8x64xf32>
    %cst_9 = arith.constant 0.000000e+00 : f32
    %10 = vector.broadcast %cst_9 : f32 to vector<8x64xf32>
    %11 = arith.maximumf %9, %10 : vector<8x64xf32>
    %c0_10 = arith.constant 0 : index
    %c0_11 = arith.constant 0 : index
    %c0_12 = arith.constant 0 : index
    %c0_13 = arith.constant 0 : index
    %12 = vector.load %arg2[%c0_10, %c0_11, %c0_12, %c0_13] : memref<1x2x8x64xf32, #tpu.memory_space<vmem>>, vector<1x1x8x64xf32>
    %13 = vector.shape_cast %12 : vector<1x1x8x64xf32> to vector<8x64xf32>
    %c0_14 = arith.constant 0 : index
    %c0_15 = arith.constant 0 : index
    %14 = vector.load %arg5[%c0_14, %c0_15] : memref<1x64xf32, #tpu.memory_space<vmem>>, vector<1x64xf32>
    %15 = vector.broadcast %14 : vector<1x64xf32> to vector<8x64xf32>
    %16 = arith.mulf %13, %15 : vector<8x64xf32>
    %17 = arith.addf %11, %16 : vector<8x64xf32>
    %c0_16 = arith.constant 0 : index
    %c0_17 = arith.constant 0 : index
    %18 = vector.load %arg6[%c0_16, %c0_17] : memref<1x64xf32, #tpu.memory_space<vmem>>, vector<1x64xf32>
    %19 = vector.broadcast %18 : vector<1x64xf32> to vector<8x64xf32>
    %20 = arith.addf %17, %19 : vector<8x64xf32>
    %cst_18 = arith.constant 0.000000e+00 : f32
    %21 = vector.broadcast %cst_18 : f32 to vector<8x64xf32>
    %22 = arith.maximumf %20, %21 : vector<8x64xf32>
    %c0_19 = arith.constant 0 : index
    %c0_20 = arith.constant 0 : index
    %23 = vector.load %arg12[%c0_19, %c0_20] : memref<10x64xf32, #tpu.memory_space<vmem>>, vector<1x64xf32>
    tpu.vector_store %arg12[%c0_19, %c0_20], %2 {strides = array<i32>} : memref<10x64xf32, #tpu.memory_space<vmem>>, vector<1x64xf32>,
    %c1 = arith.constant 1 : index
    %c0_21 = arith.constant 0 : index
    %24 = vector.load %arg12[%c1, %c0_21] : memref<10x64xf32, #tpu.memory_space<vmem>>, vector<8x64xf32>
    tpu.vector_store %arg12[%c1, %c0_21], %22 {strides = array<i32>} : memref<10x64xf32, #tpu.memory_space<vmem>>, vector<8x64xf32>,
    %c9 = arith.constant 9 : index
    %c0_22 = arith.constant 0 : index
    %25 = vector.load %arg12[%c9, %c0_22] : memref<10x64xf32, #tpu.memory_space<vmem>>, vector<1x64xf32>
    tpu.vector_store %arg12[%c9, %c0_22], %2 {strides = array<i32>} : memref<10x64xf32, #tpu.memory_space<vmem>>, vector<1x64xf32>,
    %c1_23 = arith.constant 1 : index
    %c0_24 = arith.constant 0 : index
    %c0_25 = arith.constant 0 : index
    %26 = vector.load %arg3[%c1_23, %c0_24, %c0_25] : memref<2x64x64xf32, #tpu.memory_space<vmem>>, vector<1x64x64xf32>
    %27 = vector.shape_cast %26 : vector<1x64x64xf32> to vector<64x64xf32>
    %cst_26 = arith.constant dense<0.000000e+00> : vector<8x64xf32>
    %28 = tpu.matmul %1, %27, %cst_26 {dimension_numbers = #tpu.dot_dimension_numbers<[1], [0], [0], [1], [0, 0, 1, 1], [], []>} : vector<8x64xf32>, vector<64x64xf32>, vector<8x64xf32> -> vector<8x64xf32>
    %c1_27 = arith.constant 1 : index
    %c0_28 = arith.constant 0 : index
    %c0_29 = arith.constant 0 : index
    %29 = vector.load %arg4[%c1_27, %c0_28, %c0_29] : memref<2x1x64xf32, #tpu.memory_space<vmem>>, vector<1x1x64xf32>
    %30 = vector.shape_cast %29 : vector<1x1x64xf32> to vector<1x64xf32>
    %31 = vector.broadcast %30 : vector<1x64xf32> to vector<8x64xf32>
    %32 = arith.addf %28, %31 : vector<8x64xf32>
    %cst_30 = arith.constant 0.000000e+00 : f32
    %33 = vector.broadcast %cst_30 : f32 to vector<8x64xf32>
    %34 = arith.maximumf %32, %33 : vector<8x64xf32>
    %c0_31 = arith.constant 0 : index
    %c1_32 = arith.constant 1 : index
    %c0_33 = arith.constant 0 : index
    %c0_34 = arith.constant 0 : index
    %35 = vector.load %arg2[%c0_31, %c1_32, %c0_33, %c0_34] : memref<1x2x8x64xf32, #tpu.memory_space<vmem>>, vector<1x1x8x64xf32>
    %36 = vector.shape_cast %35 : vector<1x1x8x64xf32> to vector<8x64xf32>
    %c0_35 = arith.constant 0 : index
    %c0_36 = arith.constant 0 : index
    %37 = vector.load %arg5[%c0_35, %c0_36] : memref<1x64xf32, #tpu.memory_space<vmem>>, vector<1x64xf32>
    %38 = vector.broadcast %37 : vector<1x64xf32> to vector<8x64xf32>
    %39 = arith.mulf %36, %38 : vector<8x64xf32>
    %40 = arith.addf %34, %39 : vector<8x64xf32>
    %c0_37 = arith.constant 0 : index
    %c0_38 = arith.constant 0 : index
    %41 = vector.load %arg6[%c0_37, %c0_38] : memref<1x64xf32, #tpu.memory_space<vmem>>, vector<1x64xf32>
    %42 = vector.broadcast %41 : vector<1x64xf32> to vector<8x64xf32>
    %43 = arith.addf %40, %42 : vector<8x64xf32>
    %cst_39 = arith.constant 0.000000e+00 : f32
    %44 = vector.broadcast %cst_39 : f32 to vector<8x64xf32>
    %45 = arith.maximumf %43, %44 : vector<8x64xf32>
    %c0_40 = arith.constant 0 : index
    %c0_41 = arith.constant 0 : index
    %46 = vector.load %arg13[%c0_40, %c0_41] : memref<10x64xf32, #tpu.memory_space<vmem>>, vector<1x64xf32>
    tpu.vector_store %arg13[%c0_40, %c0_41], %2 {strides = array<i32>} : memref<10x64xf32, #tpu.memory_space<vmem>>, vector<1x64xf32>,
    %c1_42 = arith.constant 1 : index
    %c0_43 = arith.constant 0 : index
    %47 = vector.load %arg13[%c1_42, %c0_43] : memref<10x64xf32, #tpu.memory_space<vmem>>, vector<8x64xf32>
    tpu.vector_store %arg13[%c1_42, %c0_43], %45 {strides = array<i32>} : memref<10x64xf32, #tpu.memory_space<vmem>>, vector<8x64xf32>,
    %c9_44 = arith.constant 9 : index
    %c0_45 = arith.constant 0 : index
    %48 = vector.load %arg13[%c9_44, %c0_45] : memref<10x64xf32, #tpu.memory_space<vmem>>, vector<1x64xf32>
    tpu.vector_store %arg13[%c9_44, %c0_45], %2 {strides = array<i32>} : memref<10x64xf32, #tpu.memory_space<vmem>>, vector<1x64xf32>,
    %c0_46 = arith.constant 0 : index
    %c0_47 = arith.constant 0 : index
    %49 = vector.load %arg12[%c0_46, %c0_47] : memref<10x64xf32, #tpu.memory_space<vmem>>, vector<10x64xf32>
    %c0_48 = arith.constant 0 : index
    %c0_49 = arith.constant 0 : index
    %50 = vector.load %arg13[%c0_48, %c0_49] : memref<10x64xf32, #tpu.memory_space<vmem>>, vector<10x64xf32>
    %c0_50 = arith.constant 0 : index
    %c0_51 = arith.constant 0 : index
    %51 = vector.load %arg8[%c0_50, %c0_51] : memref<1x64xf32, #tpu.memory_space<vmem>>, vector<1x64xf32>
    %c0_52 = arith.constant 0 : index
    %c0_53 = arith.constant 0 : index
    %c0_54 = arith.constant 0 : index
    %52 = vector.load %arg7[%c0_52, %c0_53, %c0_54] : memref<5x64x64xf32, #tpu.memory_space<vmem>>, vector<1x64x64xf32>
    %53 = vector.shape_cast %52 : vector<1x64x64xf32> to vector<64x64xf32>
    %c1_55 = arith.constant 1 : index
    %c0_56 = arith.constant 0 : index
    %c0_57 = arith.constant 0 : index
    %54 = vector.load %arg7[%c1_55, %c0_56, %c0_57] : memref<5x64x64xf32, #tpu.memory_space<vmem>>, vector<1x64x64xf32>
    %55 = vector.shape_cast %54 : vector<1x64x64xf32> to vector<64x64xf32>
    %c2 = arith.constant 2 : index
    %c0_58 = arith.constant 0 : index
    %c0_59 = arith.constant 0 : index
    %56 = vector.load %arg7[%c2, %c0_58, %c0_59] : memref<5x64x64xf32, #tpu.memory_space<vmem>>, vector<1x64x64xf32>
    %57 = vector.shape_cast %56 : vector<1x64x64xf32> to vector<64x64xf32>
    %c3 = arith.constant 3 : index
    %c0_60 = arith.constant 0 : index
    %c0_61 = arith.constant 0 : index
    %58 = vector.load %arg7[%c3, %c0_60, %c0_61] : memref<5x64x64xf32, #tpu.memory_space<vmem>>, vector<1x64x64xf32>
    %59 = vector.shape_cast %58 : vector<1x64x64xf32> to vector<64x64xf32>
    %c4 = arith.constant 4 : index
    %c0_62 = arith.constant 0 : index
    %c0_63 = arith.constant 0 : index
    %60 = vector.load %arg7[%c4, %c0_62, %c0_63] : memref<5x64x64xf32, #tpu.memory_space<vmem>>, vector<1x64x64xf32>
    %61 = vector.shape_cast %60 : vector<1x64x64xf32> to vector<64x64xf32>
    %62 = vector.extract_strided_slice %49 {offsets = [0, 0], sizes = [8, 64], strides = [1, 1]} : vector<10x64xf32> to vector<8x64xf32>
    %cst_64 = arith.constant dense<0.000000e+00> : vector<8x64xf32>
    %63 = tpu.matmul %62, %53, %cst_64 {dimension_numbers = #tpu.dot_dimension_numbers<[1], [0], [0], [1], [0, 0, 1, 1], [], []>} : vector<8x64xf32>, vector<64x64xf32>, vector<8x64xf32> -> vector<8x64xf32>
    %64 = vector.extract_strided_slice %50 {offsets = [0, 0], sizes = [8, 64], strides = [1, 1]} : vector<10x64xf32> to vector<8x64xf32>
    %cst_65 = arith.constant dense<0.000000e+00> : vector<8x64xf32>
    %65 = tpu.matmul %64, %55, %cst_65 {dimension_numbers = #tpu.dot_dimension_numbers<[1], [0], [0], [1], [0, 0, 1, 1], [], []>} : vector<8x64xf32>, vector<64x64xf32>, vector<8x64xf32> -> vector<8x64xf32>
    %66 = arith.addf %63, %65 : vector<8x64xf32>
    %67 = vector.extract_strided_slice %49 {offsets = [1, 0], sizes = [8, 64], strides = [1, 1]} : vector<10x64xf32> to vector<8x64xf32>
    %cst_66 = arith.constant dense<0.000000e+00> : vector<8x64xf32>
    %68 = tpu.matmul %67, %57, %cst_66 {dimension_numbers = #tpu.dot_dimension_numbers<[1], [0], [0], [1], [0, 0, 1, 1], [], []>} : vector<8x64xf32>, vector<64x64xf32>, vector<8x64xf32> -> vector<8x64xf32>
    %69 = arith.addf %66, %68 : vector<8x64xf32>
    %70 = vector.extract_strided_slice %50 {offsets = [1, 0], sizes = [8, 64], strides = [1, 1]} : vector<10x64xf32> to vector<8x64xf32>
    %cst_67 = arith.constant dense<0.000000e+00> : vector<8x64xf32>
    %71 = tpu.matmul %70, %59, %cst_67 {dimension_numbers = #tpu.dot_dimension_numbers<[1], [0], [0], [1], [0, 0, 1, 1], [], []>} : vector<8x64xf32>, vector<64x64xf32>, vector<8x64xf32> -> vector<8x64xf32>
    %72 = arith.addf %69, %71 : vector<8x64xf32>
    %73 = vector.extract_strided_slice %49 {offsets = [2, 0], sizes = [8, 64], strides = [1, 1]} : vector<10x64xf32> to vector<8x64xf32>
    %cst_68 = arith.constant dense<0.000000e+00> : vector<8x64xf32>
    %74 = tpu.matmul %73, %61, %cst_68 {dimension_numbers = #tpu.dot_dimension_numbers<[1], [0], [0], [1], [0, 0, 1, 1], [], []>} : vector<8x64xf32>, vector<64x64xf32>, vector<8x64xf32> -> vector<8x64xf32>
    %75 = arith.addf %72, %74 : vector<8x64xf32>
    %76 = vector.broadcast %51 : vector<1x64xf32> to vector<8x64xf32>
    %77 = arith.addf %75, %76 : vector<8x64xf32>
    %78 = vector.extract_strided_slice %50 {offsets = [0, 0], sizes = [8, 64], strides = [1, 1]} : vector<10x64xf32> to vector<8x64xf32>
    %cst_69 = arith.constant dense<0.000000e+00> : vector<8x64xf32>
    %79 = tpu.matmul %78, %53, %cst_69 {dimension_numbers = #tpu.dot_dimension_numbers<[1], [0], [0], [1], [0, 0, 1, 1], [], []>} : vector<8x64xf32>, vector<64x64xf32>, vector<8x64xf32> -> vector<8x64xf32>
    %80 = vector.extract_strided_slice %49 {offsets = [1, 0], sizes = [8, 64], strides = [1, 1]} : vector<10x64xf32> to vector<8x64xf32>
    %cst_70 = arith.constant dense<0.000000e+00> : vector<8x64xf32>
    %81 = tpu.matmul %80, %55, %cst_70 {dimension_numbers = #tpu.dot_dimension_numbers<[1], [0], [0], [1], [0, 0, 1, 1], [], []>} : vector<8x64xf32>, vector<64x64xf32>, vector<8x64xf32> -> vector<8x64xf32>
    %82 = arith.addf %79, %81 : vector<8x64xf32>
    %83 = vector.extract_strided_slice %50 {offsets = [1, 0], sizes = [8, 64], strides = [1, 1]} : vector<10x64xf32> to vector<8x64xf32>
    %cst_71 = arith.constant dense<0.000000e+00> : vector<8x64xf32>
    %84 = tpu.matmul %83, %57, %cst_71 {dimension_numbers = #tpu.dot_dimension_numbers<[1], [0], [0], [1], [0, 0, 1, 1], [], []>} : vector<8x64xf32>, vector<64x64xf32>, vector<8x64xf32> -> vector<8x64xf32>
    %85 = arith.addf %82, %84 : vector<8x64xf32>
    %86 = vector.extract_strided_slice %49 {offsets = [2, 0], sizes = [8, 64], strides = [1, 1]} : vector<10x64xf32> to vector<8x64xf32>
    %cst_72 = arith.constant dense<0.000000e+00> : vector<8x64xf32>
    %87 = tpu.matmul %86, %59, %cst_72 {dimension_numbers = #tpu.dot_dimension_numbers<[1], [0], [0], [1], [0, 0, 1, 1], [], []>} : vector<8x64xf32>, vector<64x64xf32>, vector<8x64xf32> -> vector<8x64xf32>
    %88 = arith.addf %85, %87 : vector<8x64xf32>
    %89 = vector.extract_strided_slice %50 {offsets = [2, 0], sizes = [8, 64], strides = [1, 1]} : vector<10x64xf32> to vector<8x64xf32>
    %cst_73 = arith.constant dense<0.000000e+00> : vector<8x64xf32>
    %90 = tpu.matmul %89, %61, %cst_73 {dimension_numbers = #tpu.dot_dimension_numbers<[1], [0], [0], [1], [0, 0, 1, 1], [], []>} : vector<8x64xf32>, vector<64x64xf32>, vector<8x64xf32> -> vector<8x64xf32>
    %91 = arith.addf %88, %90 : vector<8x64xf32>
    %92 = vector.broadcast %51 : vector<1x64xf32> to vector<8x64xf32>
    %93 = arith.addf %91, %92 : vector<8x64xf32>
    %c0_74 = arith.constant 0 : index
    %c0_75 = arith.constant 0 : index
    %c0_76 = arith.constant 0 : index
    %c0_77 = arith.constant 0 : index
    %94 = vector.load %arg9[%c0_74, %c0_75, %c0_76, %c0_77] : memref<1x2x8x64xf32, #tpu.memory_space<vmem>>, vector<1x1x8x64xf32>
    %95 = vector.shape_cast %94 : vector<1x1x8x64xf32> to vector<8x64xf32>
    %96 = vector.shape_cast %77 : vector<8x64xf32> to vector<1x1x8x64xf32>
    tpu.vector_store %arg9[%c0_74, %c0_75, %c0_76, %c0_77], %96 {strides = array<i32>} : memref<1x2x8x64xf32, #tpu.memory_space<vmem>>, vector<1x1x8x64xf32>,
    %c0_78 = arith.constant 0 : index
    %c1_79 = arith.constant 1 : index
    %c0_80 = arith.constant 0 : index
    %c0_81 = arith.constant 0 : index
    %97 = vector.load %arg9[%c0_78, %c1_79, %c0_80, %c0_81] : memref<1x2x8x64xf32, #tpu.memory_space<vmem>>, vector<1x1x8x64xf32>
    %98 = vector.shape_cast %97 : vector<1x1x8x64xf32> to vector<8x64xf32>
    %99 = vector.shape_cast %93 : vector<8x64xf32> to vector<1x1x8x64xf32>
    tpu.vector_store %arg9[%c0_78, %c1_79, %c0_80, %c0_81], %99 {strides = array<i32>} : memref<1x2x8x64xf32, #tpu.memory_space<vmem>>, vector<1x1x8x64xf32>,
    %cst_82 = arith.constant dense<0.000000e+00> : vector<64xf32>
    %100 = vector.multi_reduction <add>, %77, %cst_82 [0] : vector<8x64xf32> to vector<64xf32>
    %101 = vector.shape_cast %100 : vector<64xf32> to vector<1x64xf32>
    %cst_83 = arith.constant dense<0.000000e+00> : vector<64xf32>
    %102 = vector.multi_reduction <add>, %93, %cst_83 [0] : vector<8x64xf32> to vector<64xf32>
    %103 = vector.shape_cast %102 : vector<64xf32> to vector<1x64xf32>
    %104 = arith.addf %101, %103 : vector<1x64xf32>
    %c0_84 = arith.constant 0 : index
    %c0_85 = arith.constant 0 : index
    %c0_86 = arith.constant 0 : index
    %105 = vector.load %arg10[%c0_84, %c0_85, %c0_86] : memref<1x1x64xf32, #tpu.memory_space<vmem>>, vector<1x1x64xf32>
    %106 = vector.shape_cast %105 : vector<1x1x64xf32> to vector<1x64xf32>
    %107 = vector.shape_cast %104 : vector<1x64xf32> to vector<1x1x64xf32>
    tpu.vector_store %arg10[%c0_84, %c0_85, %c0_86], %107 {strides = array<i32>} : memref<1x1x64xf32, #tpu.memory_space<vmem>>, vector<1x1x64xf32>,
    %108 = arith.mulf %77, %77 : vector<8x64xf32>
    %cst_87 = arith.constant dense<0.000000e+00> : vector<64xf32>
    %109 = vector.multi_reduction <add>, %108, %cst_87 [0] : vector<8x64xf32> to vector<64xf32>
    %110 = vector.shape_cast %109 : vector<64xf32> to vector<1x64xf32>
    %111 = arith.mulf %93, %93 : vector<8x64xf32>
    %cst_88 = arith.constant dense<0.000000e+00> : vector<64xf32>
    %112 = vector.multi_reduction <add>, %111, %cst_88 [0] : vector<8x64xf32> to vector<64xf32>
    %113 = vector.shape_cast %112 : vector<64xf32> to vector<1x64xf32>
    %114 = arith.addf %110, %113 : vector<1x64xf32>
    %c0_89 = arith.constant 0 : index
    %c0_90 = arith.constant 0 : index
    %c0_91 = arith.constant 0 : index
    %115 = vector.load %arg11[%c0_89, %c0_90, %c0_91] : memref<1x1x64xf32, #tpu.memory_space<vmem>>, vector<1x1x64xf32>
    %116 = vector.shape_cast %115 : vector<1x1x64xf32> to vector<1x64xf32>
    %117 = vector.shape_cast %114 : vector<1x64xf32> to vector<1x1x64xf32>
    tpu.vector_store %arg11[%c0_89, %c0_90, %c0_91], %117 {strides = array<i32>} : memref<1x1x64xf32, #tpu.memory_space<vmem>>, vector<1x1x64xf32>,
    return
  }
  func.func @transform_0(%arg0: i32) -> (i32, i32, i32) {
    %c0_i32 = arith.constant 0 : i32
    %c0_i32_0 = arith.constant 0 : i32
    %c0_i32_1 = arith.constant 0 : i32
    return %arg0, %c0_i32, %c0_i32_0 : i32, i32, i32
  }
  func.func @transform_1(%arg0: i32) -> (i32, i32, i32, i32) {
    %c0_i32 = arith.constant 0 : i32
    %c0_i32_0 = arith.constant 0 : i32
    %c0_i32_1 = arith.constant 0 : i32
    %c0_i32_2 = arith.constant 0 : i32
    return %arg0, %c0_i32, %c0_i32_0, %c0_i32_1 : i32, i32, i32, i32
  }
  func.func @transform_2(%arg0: i32) -> (i32, i32, i32) {
    %c0_i32 = arith.constant 0 : i32
    %c0_i32_0 = arith.constant 0 : i32
    %c0_i32_1 = arith.constant 0 : i32
    %c0_i32_2 = arith.constant 0 : i32
    return %c0_i32, %c0_i32_0, %c0_i32_1 : i32, i32, i32
  }
  func.func @transform_3(%arg0: i32) -> (i32, i32, i32) {
    %c0_i32 = arith.constant 0 : i32
    %c0_i32_0 = arith.constant 0 : i32
    %c0_i32_1 = arith.constant 0 : i32
    %c0_i32_2 = arith.constant 0 : i32
    return %c0_i32, %c0_i32_0, %c0_i32_1 : i32, i32, i32
  }
  func.func @transform_4(%arg0: i32) -> (i32, i32) {
    %c0_i32 = arith.constant 0 : i32
    %c0_i32_0 = arith.constant 0 : i32
    %c0_i32_1 = arith.constant 0 : i32
    return %c0_i32, %c0_i32_0 : i32, i32
  }
  func.func @transform_5(%arg0: i32) -> (i32, i32) {
    %c0_i32 = arith.constant 0 : i32
    %c0_i32_0 = arith.constant 0 : i32
    %c0_i32_1 = arith.constant 0 : i32
    return %c0_i32, %c0_i32_0 : i32, i32
  }
  func.func @transform_6(%arg0: i32) -> (i32, i32, i32) {
    %c0_i32 = arith.constant 0 : i32
    %c0_i32_0 = arith.constant 0 : i32
    %c0_i32_1 = arith.constant 0 : i32
    %c0_i32_2 = arith.constant 0 : i32
    return %c0_i32, %c0_i32_0, %c0_i32_1 : i32, i32, i32
  }
  func.func @transform_7(%arg0: i32) -> (i32, i32) {
    %c0_i32 = arith.constant 0 : i32
    %c0_i32_0 = arith.constant 0 : i32
    %c0_i32_1 = arith.constant 0 : i32
    return %c0_i32, %c0_i32_0 : i32, i32
  }
  func.func @transform_8(%arg0: i32) -> (i32, i32, i32, i32) {
    %c0_i32 = arith.constant 0 : i32
    %c0_i32_0 = arith.constant 0 : i32
    %c0_i32_1 = arith.constant 0 : i32
    %c0_i32_2 = arith.constant 0 : i32
    return %arg0, %c0_i32, %c0_i32_0, %c0_i32_1 : i32, i32, i32, i32
  }
  func.func @transform_9(%arg0: i32) -> (i32, i32, i32) {
    %c0_i32 = arith.constant 0 : i32
    %c0_i32_0 = arith.constant 0 : i32
    %c0_i32_1 = arith.constant 0 : i32
    return %arg0, %c0_i32, %c0_i32_0 : i32, i32, i32
  }
  func.func @transform_10(%arg0: i32) -> (i32, i32, i32) {
    %c0_i32 = arith.constant 0 : i32
    %c0_i32_0 = arith.constant 0 : i32
    %c0_i32_1 = arith.constant 0 : i32
    return %arg0, %c0_i32, %c0_i32_0 : i32, i32, i32
  }
}

module attributes {stable_mosaic.version = 11 : i64} {
  func.func @_affine_relu_kernel(%arg0: i32, %arg1: memref<16x128xf32, #tpu.memory_space<vmem>>, %arg2: memref<1x128xf32, #tpu.memory_space<vmem>>, %arg3: memref<1x128xf32, #tpu.memory_space<vmem>>, %arg4: memref<16x128xf32, #tpu.memory_space<vmem>>) attributes {dimension_semantics = [#tpu.dimension_semantics<parallel>], iteration_bounds = array<i64: 1>, scalar_prefetch = 0 : i64, scratch_operands = 0 : i64, tpu.core_type = #tpu.core_type<tc>, window_params = [{transform_indices = @transform_0, window_bounds = array<i64: 16, 128>}, {pipeline_mode = #tpu.pipeline_mode<synchronous>, transform_indices = @transform_1, window_bounds = array<i64: 1, 128>}, {pipeline_mode = #tpu.pipeline_mode<synchronous>, transform_indices = @transform_2, window_bounds = array<i64: 1, 128>}, {transform_indices = @transform_3, window_bounds = array<i64: 16, 128>}]} {
    %c0 = arith.constant 0 : index
    %c0_0 = arith.constant 0 : index
    %0 = vector.load %arg1[%c0, %c0_0] : memref<16x128xf32, #tpu.memory_space<vmem>>, vector<16x128xf32>
    %c0_1 = arith.constant 0 : index
    %c0_2 = arith.constant 0 : index
    %1 = vector.load %arg2[%c0_1, %c0_2] : memref<1x128xf32, #tpu.memory_space<vmem>>, vector<1x128xf32>
    %2 = vector.broadcast %1 : vector<1x128xf32> to vector<16x128xf32>
    %3 = arith.mulf %0, %2 : vector<16x128xf32>
    %c0_3 = arith.constant 0 : index
    %c0_4 = arith.constant 0 : index
    %4 = vector.load %arg3[%c0_3, %c0_4] : memref<1x128xf32, #tpu.memory_space<vmem>>, vector<1x128xf32>
    %5 = vector.broadcast %4 : vector<1x128xf32> to vector<16x128xf32>
    %6 = arith.addf %3, %5 : vector<16x128xf32>
    %cst = arith.constant 0.000000e+00 : f32
    %7 = vector.broadcast %cst : f32 to vector<16x128xf32>
    %8 = arith.maximumf %6, %7 : vector<16x128xf32>
    %c0_5 = arith.constant 0 : index
    %c0_6 = arith.constant 0 : index
    %9 = vector.load %arg4[%c0_5, %c0_6] : memref<16x128xf32, #tpu.memory_space<vmem>>, vector<16x128xf32>
    tpu.vector_store %arg4[%c0_5, %c0_6], %8 {strides = array<i32>} : memref<16x128xf32, #tpu.memory_space<vmem>>, vector<16x128xf32>,
    return
  }
  func.func @transform_0(%arg0: i32) -> (i32, i32) {
    %c0_i32 = arith.constant 0 : i32
    %c0_i32_0 = arith.constant 0 : i32
    return %arg0, %c0_i32 : i32, i32
  }
  func.func @transform_1(%arg0: i32) -> (i32, i32) {
    %c0_i32 = arith.constant 0 : i32
    %c0_i32_0 = arith.constant 0 : i32
    %c0_i32_1 = arith.constant 0 : i32
    return %c0_i32, %c0_i32_0 : i32, i32
  }
  func.func @transform_2(%arg0: i32) -> (i32, i32) {
    %c0_i32 = arith.constant 0 : i32
    %c0_i32_0 = arith.constant 0 : i32
    %c0_i32_1 = arith.constant 0 : i32
    return %c0_i32, %c0_i32_0 : i32, i32
  }
  func.func @transform_3(%arg0: i32) -> (i32, i32) {
    %c0_i32 = arith.constant 0 : i32
    %c0_i32_0 = arith.constant 0 : i32
    return %arg0, %c0_i32 : i32, i32
  }
}

</mosaic_0001>

<llo_original>
// kernel: squeeze.4
$region0: #{squeeze.4}
  %s0 = inlined_call_operand.vmem [shape: f32[128], index: 0, kind: input, shape index: {}]
  %s1 = inlined_call_operand.vmem [shape: f32[32,4], index: 1, kind: output, shape index: {}]
  $region1: #{squeeze.4} parent=0
    #allocation0 [shape = 'u8[4096]{0}', space=vmem, size = 0x1000, scoped, tag = 'scoped mem for input reshape']
    %s3 = sshllo.u32 0, 1
    %v4 = vld [vmem:[%s0] sm:%s3]
    %5 = vst [vmem:[#allocation0] sm:%s3] %v4
    %v6 = vld [vmem:[#allocation0] sm:$0x1]
    %vm7 = vcmask 31744
    %8 = vst.msk [vmem:[%s1] sm:$0x1] %vm7, %v6
    %v9 = vld [vmem:[#allocation0] sm:$0x1]
    %10 = vrot.lane.b32.xlu0 %v9, 124
    %v11 = vpop.permute.xlu0 %10
    %vm12 = vcmask 31744
    %s13 = scalar_lea.vmem %s1, 1
    %14 = vst.msk [vmem:[%s13] sm:$0x1] %vm12, %v11
    %v15 = vld [vmem:[#allocation0] sm:$0x1]
    %16 = vrot.lane.b32.xlu0 %v15, 120
    %v17 = vpop.permute.xlu0 %16
    %vm18 = vcmask 31744
    %s19 = scalar_lea.vmem %s1, 2
    %20 = vst.msk [vmem:[%s19] sm:$0x1] %vm18, %v17
    %v21 = vld [vmem:[#allocation0] sm:$0x1]
    %22 = vrot.lane.b32.xlu0 %v21, 116
    %v23 = vpop.permute.xlu0 %22
    %vm24 = vcmask 31744
    %s25 = scalar_lea.vmem %s1, 3
    %26 = vst.msk [vmem:[%s25] sm:$0x1] %vm24, %v23
    %v27 = vld [vmem:[#allocation0] sm:$0x1]
    %28 = vrot.lane.b32.xlu0 %v27, 112
    %v29 = vpop.permute.xlu0 %28
    %vm30 = vcmask 31744
    %s31 = scalar_lea.vmem %s1, 4
    %32 = vst.msk [vmem:[%s31] sm:$0x1] %vm30, %v29
    %v33 = vld [vmem:[#allocation0] sm:$0x1]
    %34 = vrot.lane.b32.xlu0 %v33, 108
    %v35 = vpop.permute.xlu0 %34
    %vm36 = vcmask 31744
    %s37 = scalar_lea.vmem %s1, 5
    %38 = vst.msk [vmem:[%s37] sm:$0x1] %vm36, %v35
    %v39 = vld [vmem:[#allocation0] sm:$0x1]
    %40 = vrot.lane.b32.xlu0 %v39, 104
    %v41 = vpop.permute.xlu0 %40
    %vm42 = vcmask 31744
    %s43 = scalar_lea.vmem %s1, 6
    %44 = vst.msk [vmem:[%s43] sm:$0x1] %vm42, %v41
    %v45 = vld [vmem:[#allocation0] sm:$0x1]
    %46 = vrot.lane.b32.xlu0 %v45, 100
    %v47 = vpop.permute.xlu0 %46
    %vm48 = vcmask 31744
    %s49 = scalar_lea.vmem %s1, 7
    %50 = vst.msk [vmem:[%s49] sm:$0x1] %vm48, %v47
    %v51 = vld [vmem:[#allocation0] sm:$0x1]
    %52 = vrot.lane.b32.xlu0 %v51, 96
    %v53 = vpop.permute.xlu0 %52
    %vm54 = vcmask 31744
    %s55 = scalar_lea.vmem %s1, 8
    %56 = vst.msk [vmem:[%s55] sm:$0x1] %vm54, %v53
    %v57 = vld [vmem:[#allocation0] sm:$0x1]
    %58 = vrot.lane.b32.xlu0 %v57, 92
    %v59 = vpop.permute.xlu0 %58
    %vm60 = vcmask 31744
    %s61 = scalar_lea.vmem %s1, 9
    %62 = vst.msk [vmem:[%s61] sm:$0x1] %vm60, %v59
    %v63 = vld [vmem:[#allocation0] sm:$0x1]
    %64 = vrot.lane.b32.xlu0 %v63, 88
    %v65 = vpop.permute.xlu0 %64
    %vm66 = vcmask 31744
    %s67 = scalar_lea.vmem %s1, 10
    %68 = vst.msk [vmem:[%s67] sm:$0x1] %vm66, %v65
    %v69 = vld [vmem:[#allocation0] sm:$0x1]
    %70 = vrot.lane.b32.xlu0 %v69, 84
    %v71 = vpop.permute.xlu0 %70
    %vm72 = vcmask 31744
    %s73 = scalar_lea.vmem %s1, 11
    %74 = vst.msk [vmem:[%s73] sm:$0x1] %vm72, %v71
    %v75 = vld [vmem:[#allocation0] sm:$0x1]
    %76 = vrot.lane.b32.xlu0 %v75, 80
    %v77 = vpop.permute.xlu0 %76
    %vm78 = vcmask 31744
    %s79 = scalar_lea.vmem %s1, 12
    %80 = vst.msk [vmem:[%s79] sm:$0x1] %vm78, %v77
    %v81 = vld [vmem:[#allocation0] sm:$0x1]
    %82 = vrot.lane.b32.xlu0 %v81, 76
    %v83 = vpop.permute.xlu0 %82
    %vm84 = vcmask 31744
    %s85 = scalar_lea.vmem %s1, 13
    %86 = vst.msk [vmem:[%s85] sm:$0x1] %vm84, %v83
    %v87 = vld [vmem:[#allocation0] sm:$0x1]
    %88 = vrot.lane.b32.xlu0 %v87, 72
    %v89 = vpop.permute.xlu0 %88
    %vm90 = vcmask 31744
    %s91 = scalar_lea.vmem %s1, 14
    %92 = vst.msk [vmem:[%s91] sm:$0x1] %vm90, %v89
    %v93 = vld [vmem:[#allocation0] sm:$0x1]
    %94 = vrot.lane.b32.xlu0 %v93, 68
    %v95 = vpop.permute.xlu0 %94
    %vm96 = vcmask 31744
    %s97 = scalar_lea.vmem %s1, 15
    %98 = vst.msk [vmem:[%s97] sm:$0x1] %vm96, %v95
    %v99 = vld [vmem:[#allocation0] sm:$0x1]
    %100 = vrot.lane.b32.xlu0 %v99, 64
    %v101 = vpop.permute.xlu0 %100
    %vm102 = vcmask 31744
    %s103 = scalar_lea.vmem %s1, 16
    %104 = vst.msk [vmem:[%s103] sm:$0x1] %vm102, %v101
    %v105 = vld [vmem:[#allocation0] sm:$0x1]
    %106 = vrot.lane.b32.xlu0 %v105, 60
    %v107 = vpop.permute.xlu0 %106
    %vm108 = vcmask 31744
    %s109 = scalar_lea.vmem %s1, 17
    %110 = vst.msk [vmem:[%s109] sm:$0x1] %vm108, %v107
    %v111 = vld [vmem:[#allocation0] sm:$0x1]
    %112 = vrot.lane.b32.xlu0 %v111, 56
    %v113 = vpop.permute.xlu0 %112
    %vm114 = vcmask 31744
    %s115 = scalar_lea.vmem %s1, 18
    %116 = vst.msk [vmem:[%s115] sm:$0x1] %vm114, %v113
    %v117 = vld [vmem:[#allocation0] sm:$0x1]
    %118 = vrot.lane.b32.xlu0 %v117, 52
    %v119 = vpop.permute.xlu0 %118
    %vm120 = vcmask 31744
    %s121 = scalar_lea.vmem %s1, 19
    %122 = vst.msk [vmem:[%s121] sm:$0x1] %vm120, %v119
    %v123 = vld [vmem:[#allocation0] sm:$0x1]
    %124 = vrot.lane.b32.xlu0 %v123, 48
    %v125 = vpop.permute.xlu0 %124
    %vm126 = vcmask 31744
    %s127 = scalar_lea.vmem %s1, 20
    %128 = vst.msk [vmem:[%s127] sm:$0x1] %vm126, %v125
    %v129 = vld [vmem:[#allocation0] sm:$0x1]
    %130 = vrot.lane.b32.xlu0 %v129, 44
    %v131 = vpop.permute.xlu0 %130
    %vm132 = vcmask 31744
    %s133 = scalar_lea.vmem %s1, 21
    %134 = vst.msk [vmem:[%s133] sm:$0x1] %vm132, %v131
    %v135 = vld [vmem:[#allocation0] sm:$0x1]
    %136 = vrot.lane.b32.xlu0 %v135, 40
    %v137 = vpop.permute.xlu0 %136
    %vm138 = vcmask 31744
    %s139 = scalar_lea.vmem %s1, 22
    %140 = vst.msk [vmem:[%s139] sm:$0x1] %vm138, %v137
    %v141 = vld [vmem:[#allocation0] sm:$0x1]
    %142 = vrot.lane.b32.xlu0 %v141, 36
    %v143 = vpop.permute.xlu0 %142
    %vm144 = vcmask 31744
    %s145 = scalar_lea.vmem %s1, 23
    %146 = vst.msk [vmem:[%s145] sm:$0x1] %vm144, %v143
    %v147 = vld [vmem:[#allocation0] sm:$0x1]
    %148 = vrot.lane.b32.xlu0 %v147, 32
    %v149 = vpop.permute.xlu0 %148
    %vm150 = vcmask 31744
    %s151 = scalar_lea.vmem %s1, 24
    %152 = vst.msk [vmem:[%s151] sm:$0x1] %vm150, %v149
    %v153 = vld [vmem:[#allocation0] sm:$0x1]
    %154 = vrot.lane.b32.xlu0 %v153, 28
    %v155 = vpop.permute.xlu0 %154
    %vm156 = vcmask 31744
    %s157 = scalar_lea.vmem %s1, 25
    %158 = vst.msk [vmem:[%s157] sm:$0x1] %vm156, %v155
    %v159 = vld [vmem:[#allocation0] sm:$0x1]
    %160 = vrot.lane.b32.xlu0 %v159, 24
    %v161 = vpop.permute.xlu0 %160
    %vm162 = vcmask 31744
    %s163 = scalar_lea.vmem %s1, 26
    %164 = vst.msk [vmem:[%s163] sm:$0x1] %vm162, %v161
    %v165 = vld [vmem:[#allocation0] sm:$0x1]
    %166 = vrot.lane.b32.xlu0 %v165, 20
    %v167 = vpop.permute.xlu0 %166
    %vm168 = vcmask 31744
    %s169 = scalar_lea.vmem %s1, 27
    %170 = vst.msk [vmem:[%s169] sm:$0x1] %vm168, %v167
    %v171 = vld [vmem:[#allocation0] sm:$0x1]
    %172 = vrot.lane.b32.xlu0 %v171, 16
    %v173 = vpop.permute.xlu0 %172
    %vm174 = vcmask 31744
    %s175 = scalar_lea.vmem %s1, 28
    %176 = vst.msk [vmem:[%s175] sm:$0x1] %vm174, %v173
    %v177 = vld [vmem:[#allocation0] sm:$0x1]
    %178 = vrot.lane.b32.xlu0 %v177, 12
    %v179 = vpop.permute.xlu0 %178
    %vm180 = vcmask 31744
    %s181 = scalar_lea.vmem %s1, 29
    %182 = vst.msk [vmem:[%s181] sm:$0x1] %vm180, %v179
    %v183 = vld [vmem:[#allocation0] sm:$0x1]
    %184 = vrot.lane.b32.xlu0 %v183, 8
    %v185 = vpop.permute.xlu0 %184
    %vm186 = vcmask 31744
    %s187 = scalar_lea.vmem %s1, 30
    %188 = vst.msk [vmem:[%s187] sm:$0x1] %vm186, %v185
    %v189 = vld [vmem:[#allocation0] sm:$0x1]
    %190 = vrot.lane.b32.xlu0 %v189, 4
    %v191 = vpop.permute.xlu0 %190
    %vm192 = vcmask 31744
    %s193 = scalar_lea.vmem %s1, 31
    %194 = vst.msk [vmem:[%s193] sm:$0x1] %vm192, %v191

// kernel: tile.33
$region0: #{tile.33}
  #allocation0 [shape = 's32[1]{0}', space=sflag, size = 0x4, scoped, tag = 'scoped memory for tile.33']
  %s0 = inlined_call_operand.vmem [shape: f32[4], index: 0, kind: input, shape index: {}]
  %s1 = inlined_call_operand.vmem [shape: f32[16,4], index: 1, kind: output, shape index: {}]
  // Predicated region
  $region2: #{tile.33} parent=0 // pred_check
    _
  $region3: #{tile.33} parent=0 // pred_check_branch
    %3 = sbr.rel (0) target = $region5
  $region4: #{tile.33} parent=0 // pred_region
    _
  $region5: #{tile.33} parent=0 // pred_fallthru
    _
  %v4 = vld [vmem:[%s0] ss:$0 sm:$0xff]
  %5 = vst [vmem:[%s1] sm:$0xff] %v4
  %s6 = scalar_lea.vmem %s1, 8
  %7 = vst [vmem:[%s6] sm:$0xff] %v4

// kernel: tile.34
$region0: #{tile.34}
  %s0 = inlined_call_operand.vmem [shape: f32[16,4], index: 0, kind: input, shape index: {}]
  %s1 = inlined_call_operand.vmem [shape: f32[1,64], index: 1, kind: output, shape index: {}]
  $region1: #{tile.34} parent=0
    #allocation0 [shape = 'u8[4096]{0}', space=vmem, size = 0x1000, scoped, tag = 'scoped mem for output reshape']
    %v2 = vld [vmem:[%s0] sm:$0x1]
    %vm3 = vcmask 31744
    %4 = vst.msk [vmem:[#allocation0] sm:$0x1] %vm3, %v2
    %s5 = scalar_lea.vmem %s0, 15
    %v6 = vld [vmem:[%s5] sm:$0x1]
    %7 = vrot.lane.b32.xlu0 %v6, 60
    %v8 = vpop.permute.xlu0 %7
    %vm9 = vcmask 523744
    %10 = vst.msk [vmem:[#allocation0] sm:$0x1] %vm9, %v8
    %s11 = scalar_lea.vmem %s0, 14
    %v12 = vld [vmem:[%s11] sm:$0x1]
    %13 = vrot.lane.b32.xlu0 %v12, 56
    %v14 = vpop.permute.xlu0 %13
    %vm15 = vcmask 490944
    %16 = vst.msk [vmem:[#allocation0] sm:$0x1] %vm15, %v14
    %s17 = scalar_lea.vmem %s0, 13
    %v18 = vld [vmem:[%s17] sm:$0x1]
    %19 = vrot.lane.b32.xlu0 %v18, 52
    %v20 = vpop.permute.xlu0 %19
    %vm21 = vcmask 458144
    %22 = vst.msk [vmem:[#allocation0] sm:$0x1] %vm21, %v20
    %s23 = scalar_lea.vmem %s0, 12
    %v24 = vld [vmem:[%s23] sm:$0x1]
    %25 = vrot.lane.b32.xlu0 %v24, 48
    %v26 = vpop.permute.xlu0 %25
    %vm27 = vcmask 425344
    %28 = vst.msk [vmem:[#allocation0] sm:$0x1] %vm27, %v26
    %s29 = scalar_lea.vmem %s0, 11
    %v30 = vld [vmem:[%s29] sm:$0x1]
    %31 = vrot.lane.b32.xlu0 %v30, 44
    %v32 = vpop.permute.xlu0 %31
    %vm33 = vcmask 392544
    %34 = vst.msk [vmem:[#allocation0] sm:$0x1] %vm33, %v32
    %s35 = scalar_lea.vmem %s0, 10
    %v36 = vld [vmem:[%s35] sm:$0x1]
    %37 = vrot.lane.b32.xlu0 %v36, 40
    %v38 = vpop.permute.xlu0 %37
    %vm39 = vcmask 359744
    %40 = vst.msk [vmem:[#allocation0] sm:$0x1] %vm39, %v38
    %s41 = scalar_lea.vmem %s0, 9
    %v42 = vld [vmem:[%s41] sm:$0x1]
    %43 = vrot.lane.b32.xlu0 %v42, 36
    %v44 = vpop.permute.xlu0 %43
    %vm45 = vcmask 326944
    %46 = vst.msk [vmem:[#allocation0] sm:$0x1] %vm45, %v44
    %s47 = scalar_lea.vmem %s0, 8
    %v48 = vld [vmem:[%s47] sm:$0x1]
    %49 = vrot.lane.b32.xlu0 %v48, 32
    %v50 = vpop.permute.xlu0 %49
    %vm51 = vcmask 294144
    %52 = vst.msk [vmem:[#allocation0] sm:$0x1] %vm51, %v50
    %s53 = scalar_lea.vmem %s0, 7
    %v54 = vld [vmem:[%s53] sm:$0x1]
    %55 = vrot.lane.b32.xlu0 %v54, 28
    %v56 = vpop.permute.xlu0 %55
    %vm57 = vcmask 261344
    %58 = vst.msk [vmem:[#allocation0] sm:$0x1] %vm57, %v56
    %s59 = scalar_lea.vmem %s0, 6
    %v60 = vld [vmem:[%s59] sm:$0x1]
    %61 = vrot.lane.b32.xlu0 %v60, 24
    %v62 = vpop.permute.xlu0 %61
    %vm63 = vcmask 228544
    %64 = vst.msk [vmem:[#allocation0] sm:$0x1] %vm63, %v62
    %s65 = scalar_lea.vmem %s0, 5
    %v66 = vld [vmem:[%s65] sm:$0x1]
    %67 = vrot.lane.b32.xlu0 %v66, 20
    %v68 = vpop.permute.xlu0 %67
    %vm69 = vcmask 195744
    %70 = vst.msk [vmem:[#allocation0] sm:$0x1] %vm69, %v68
    %s71 = scalar_lea.vmem %s0, 4
    %v72 = vld [vmem:[%s71] sm:$0x1]
    %73 = vrot.lane.b32.xlu0 %v72, 16
    %v74 = vpop.permute.xlu0 %73
    %vm75 = vcmask 162944
    %76 = vst.msk [vmem:[#allocation0] sm:$0x1] %vm75, %v74
    %s77 = scalar_lea.vmem %s0, 3
    %v78 = vld [vmem:[%s77] sm:$0x1]
    %79 = vrot.lane.b32.xlu0 %v78, 12
    %v80 = vpop.permute.xlu0 %79
    %vm81 = vcmask 130144
    %82 = vst.msk [vmem:[#allocation0] sm:$0x1] %vm81, %v80
    %s83 = scalar_lea.vmem %s0, 2
    %v84 = vld [vmem:[%s83] sm:$0x1]
    %85 = vrot.lane.b32.xlu0 %v84, 8
    %v86 = vpop.permute.xlu0 %85
    %vm87 = vcmask 97344
    %88 = vst.msk [vmem:[#allocation0] sm:$0x1] %vm87, %v86
    %s89 = scalar_lea.vmem %s0, 1
    %v90 = vld [vmem:[%s89] sm:$0x1]
    %91 = vrot.lane.b32.xlu0 %v90, 4
    %v92 = vpop.permute.xlu0 %91
    %vm93 = vcmask 64544
    %94 = vst.msk [vmem:[#allocation0] sm:$0x1] %vm93, %v92
    %s96 = sshllo.u32 0, 1
    %v98 = vld [vmem:[#allocation0] sm:%s96]
    %s99 = sshllo.u32 0, 1
    %100 = vst [vmem:[%s1] sm:%s99] %v98

// kernel: _upblock_forward.3
$region0: #{_upblock_forward.3}
  #allocation0 [shape = 'u32[]', space=smem, size = 0x4, offset = 0x4, fixed_abs, tag = 'smem constant byte address 0x4 - core index']
  #allocation1 [shape = 'u32[144,128]{1,0:T(1,128)}', space=vmem, size = 0x12000, scoped, tag = 'internal scratch']
  %s0 = inlined_call_operand.vmem [shape: f32[16,128], index: 0, kind: input, shape index: {}]
  %s1 = inlined_call_operand.vmem [shape: f32[1,128], index: 1, kind: output, shape index: {0}]
  %s2 = inlined_call_operand.vmem [shape: f32[1,128], index: 2, kind: output, shape index: {1}]
  %3 = xla_tuple %s1, %s2
  %s4 = sld [smem:[#allocation0]]
  $region26: #{_upblock_forward.3} parent=0
    _
  %s6 = ssub.s32 1, %s4
  %s7 = scalar_select 0, %s6, %s4
  // Predicated region
  $region2: #{_upblock_forward.3} parent=0 // pred_check
    _
  $region3: #{_upblock_forward.3} parent=0 // pred_check_branch
    %9 = sbr.rel (0) target = $region5
  $region4: #{_upblock_forward.3} parent=0 // pred_region
    _
  $region5: #{_upblock_forward.3} parent=0 // pred_fallthru
    _
  %p10 = scmp.eq.s32.totalorder 0, 0
  // Predicated region
  $region6: #{_upblock_forward.3} parent=0 // pred_check
    %p11 = pneg %p10
  $region7: #{_upblock_forward.3} parent=0 // pred_check_branch
    %13 = sbr.rel (%p11) target = $region9
  $region8: #{_upblock_forward.3} parent=0 // pred_region
    %14 = vst [vmem:[%s1] sm:$0x1] 0.0
    %15 = vst [vmem:[%s2] sm:$0x1] 0.0
  $region9: #{_upblock_forward.3} parent=0 // pred_fallthru
    _
  %v16 = vld [vmem:[%s0] sm:$0xff]
  %v17 = vld [vmem:[%s0 + $0x8] sm:$0xff]
  %v18 = vld [vmem:[%s1] sm:$0x1]
  %v19 = vadd.f32 %v16, %v17
  %v20 = vrot.slane %v19, 4
  %v21 = vadd.f32 %v19, %v20
  %v22 = vrot.slane %v21, 2
  %v23 = vadd.f32 %v21, %v22
  %v24 = vrot.slane %v23, 1
  %v25 = vadd.f32 %v23, %v24
  %v26 = vadd.f32 %v18, %v25
  %27 = vst [vmem:[%s1] sm:$0x1] %v26
  %v28 = vld [vmem:[%s2] sm:$0x1]
  %v29 = vmul.f32 %v16, %v16
  %v30 = vmul.f32 %v17, %v17
  %v31 = vadd.f32 %v29, %v30
  %v32 = vrot.slane %v31, 4
  %v33 = vadd.f32 %v31, %v32
  %v34 = vrot.slane %v33, 2
  %v35 = vadd.f32 %v33, %v34
  %v36 = vrot.slane %v35, 1
  %v37 = vadd.f32 %v35, %v36
  %v38 = vadd.f32 %v28, %v37
  %39 = vst [vmem:[%s2] sm:$0x1] %v38
  // Predicated region
  $region10: #{_upblock_forward.3} parent=0 // pred_check
    _
  $region11: #{_upblock_forward.3} parent=0 // pred_check_branch
    %41 = sbr.rel (0) target = $region13
  $region12: #{_upblock_forward.3} parent=0 // pred_region
    _
  $region13: #{_upblock_forward.3} parent=0 // pred_fallthru
    _
  // Predicated region
  $region14: #{_upblock_forward.3} parent=0 // pred_check
    _
  $region15: #{_upblock_forward.3} parent=0 // pred_check_branch
    %43 = sbr.rel (0) target = $region17
  $region16: #{_upblock_forward.3} parent=0 // pred_region
    _
  $region17: #{_upblock_forward.3} parent=0 // pred_fallthru
    _
  // Predicated region
  $region18: #{_upblock_forward.3} parent=0 // pred_check
    _
  $region19: #{_upblock_forward.3} parent=0 // pred_check_branch
    %45 = sbr.rel (0) target = $region21
  $region20: #{_upblock_forward.3} parent=0 // pred_region
    _
  $region21: #{_upblock_forward.3} parent=0 // pred_fallthru
    _
  // Predicated region
  $region22: #{_upblock_forward.3} parent=0 // pred_check
    _
  $region23: #{_upblock_forward.3} parent=0 // pred_check_branch
    %47 = sbr.rel (0) target = $region25
  $region24: #{_upblock_forward.3} parent=0 // pred_region
    _
  $region25: #{_upblock_forward.3} parent=0 // pred_fallthru
    _

// kernel: squeeze.6
$region0: #{squeeze.6}
  %s0 = inlined_call_operand.vmem [shape: f32[64], index: 0, kind: input, shape index: {}]
  %s1 = inlined_call_operand.vmem [shape: f32[16,4], index: 1, kind: output, shape index: {}]
  $region1: #{squeeze.6} parent=0
    #allocation0 [shape = 'u8[4096]{0}', space=vmem, size = 0x1000, scoped, tag = 'scoped mem for input reshape']
    %s3 = sshllo.u32 0, 1
    %v4 = vld [vmem:[%s0] sm:%s3]
    %5 = vst [vmem:[#allocation0] sm:%s3] %v4
    %v6 = vld [vmem:[#allocation0] sm:$0x1]
    %vm7 = vcmask 31744
    %8 = vst.msk [vmem:[%s1] sm:$0x1] %vm7, %v6
    %v9 = vld [vmem:[#allocation0] sm:$0x1]
    %10 = vrot.lane.b32.xlu0 %v9, 124
    %v11 = vpop.permute.xlu0 %10
    %vm12 = vcmask 31744
    %s13 = scalar_lea.vmem %s1, 1
    %14 = vst.msk [vmem:[%s13] sm:$0x1] %vm12, %v11
    %v15 = vld [vmem:[#allocation0] sm:$0x1]
    %16 = vrot.lane.b32.xlu0 %v15, 120
    %v17 = vpop.permute.xlu0 %16
    %vm18 = vcmask 31744
    %s19 = scalar_lea.vmem %s1, 2
    %20 = vst.msk [vmem:[%s19] sm:$0x1] %vm18, %v17
    %v21 = vld [vmem:[#allocation0] sm:$0x1]
    %22 = vrot.lane.b32.xlu0 %v21, 116
    %v23 = vpop.permute.xlu0 %22
    %vm24 = vcmask 31744
    %s25 = scalar_lea.vmem %s1, 3
    %26 = vst.msk [vmem:[%s25] sm:$0x1] %vm24, %v23
    %v27 = vld [vmem:[#allocation0] sm:$0x1]
    %28 = vrot.lane.b32.xlu0 %v27, 112
    %v29 = vpop.permute.xlu0 %28
    %vm30 = vcmask 31744
    %s31 = scalar_lea.vmem %s1, 4
    %32 = vst.msk [vmem:[%s31] sm:$0x1] %vm30, %v29
    %v33 = vld [vmem:[#allocation0] sm:$0x1]
    %34 = vrot.lane.b32.xlu0 %v33, 108
    %v35 = vpop.permute.xlu0 %34
    %vm36 = vcmask 31744
    %s37 = scalar_lea.vmem %s1, 5
    %38 = vst.msk [vmem:[%s37] sm:$0x1] %vm36, %v35
    %v39 = vld [vmem:[#allocation0] sm:$0x1]
    %40 = vrot.lane.b32.xlu0 %v39, 104
    %v41 = vpop.permute.xlu0 %40
    %vm42 = vcmask 31744
    %s43 = scalar_lea.vmem %s1, 6
    %44 = vst.msk [vmem:[%s43] sm:$0x1] %vm42, %v41
    %v45 = vld [vmem:[#allocation0] sm:$0x1]
    %46 = vrot.lane.b32.xlu0 %v45, 100
    %v47 = vpop.permute.xlu0 %46
    %vm48 = vcmask 31744
    %s49 = scalar_lea.vmem %s1, 7
    %50 = vst.msk [vmem:[%s49] sm:$0x1] %vm48, %v47
    %v51 = vld [vmem:[#allocation0] sm:$0x1]
    %52 = vrot.lane.b32.xlu0 %v51, 96
    %v53 = vpop.permute.xlu0 %52
    %vm54 = vcmask 31744
    %s55 = scalar_lea.vmem %s1, 8
    %56 = vst.msk [vmem:[%s55] sm:$0x1] %vm54, %v53
    %v57 = vld [vmem:[#allocation0] sm:$0x1]
    %58 = vrot.lane.b32.xlu0 %v57, 92
    %v59 = vpop.permute.xlu0 %58
    %vm60 = vcmask 31744
    %s61 = scalar_lea.vmem %s1, 9
    %62 = vst.msk [vmem:[%s61] sm:$0x1] %vm60, %v59
    %v63 = vld [vmem:[#allocation0] sm:$0x1]
    %64 = vrot.lane.b32.xlu0 %v63, 88
    %v65 = vpop.permute.xlu0 %64
    %vm66 = vcmask 31744
    %s67 = scalar_lea.vmem %s1, 10
    %68 = vst.msk [vmem:[%s67] sm:$0x1] %vm66, %v65
    %v69 = vld [vmem:[#allocation0] sm:$0x1]
    %70 = vrot.lane.b32.xlu0 %v69, 84
    %v71 = vpop.permute.xlu0 %70
    %vm72 = vcmask 31744
    %s73 = scalar_lea.vmem %s1, 11
    %74 = vst.msk [vmem:[%s73] sm:$0x1] %vm72, %v71
    %v75 = vld [vmem:[#allocation0] sm:$0x1]
    %76 = vrot.lane.b32.xlu0 %v75, 80
    %v77 = vpop.permute.xlu0 %76
    %vm78 = vcmask 31744
    %s79 = scalar_lea.vmem %s1, 12
    %80 = vst.msk [vmem:[%s79] sm:$0x1] %vm78, %v77
    %v81 = vld [vmem:[#allocation0] sm:$0x1]
    %82 = vrot.lane.b32.xlu0 %v81, 76
    %v83 = vpop.permute.xlu0 %82
    %vm84 = vcmask 31744
    %s85 = scalar_lea.vmem %s1, 13
    %86 = vst.msk [vmem:[%s85] sm:$0x1] %vm84, %v83
    %v87 = vld [vmem:[#allocation0] sm:$0x1]
    %88 = vrot.lane.b32.xlu0 %v87, 72
    %v89 = vpop.permute.xlu0 %88
    %vm90 = vcmask 31744
    %s91 = scalar_lea.vmem %s1, 14
    %92 = vst.msk [vmem:[%s91] sm:$0x1] %vm90, %v89
    %v93 = vld [vmem:[#allocation0] sm:$0x1]
    %94 = vrot.lane.b32.xlu0 %v93, 68
    %v95 = vpop.permute.xlu0 %94
    %vm96 = vcmask 31744
    %s97 = scalar_lea.vmem %s1, 15
    %98 = vst.msk [vmem:[%s97] sm:$0x1] %vm96, %v95

// kernel: tile.43
$region0: #{tile.43}
  #allocation0 [shape = 's32[1]{0}', space=sflag, size = 0x4, scoped, tag = 'scoped memory for tile.43']
  %s0 = inlined_call_operand.vmem [shape: f32[4], index: 0, kind: input, shape index: {}]
  %s1 = inlined_call_operand.vmem [shape: f32[32,4], index: 1, kind: output, shape index: {}]
  // Predicated region
  $region2: #{tile.43} parent=0 // pred_check
    _
  $region3: #{tile.43} parent=0 // pred_check_branch
    %3 = sbr.rel (0) target = $region5
  $region4: #{tile.43} parent=0 // pred_region
    _
  $region5: #{tile.43} parent=0 // pred_fallthru
    _
  %v4 = vld [vmem:[%s0] ss:$0 sm:$0xff]
  %5 = vst [vmem:[%s1] sm:$0xff] %v4
  %s6 = scalar_lea.vmem %s1, 8
  %7 = vst [vmem:[%s6] sm:$0xff] %v4
  %s8 = scalar_lea.vmem %s1, 16
  %9 = vst [vmem:[%s8] sm:$0xff] %v4
  %s10 = scalar_lea.vmem %s1, 24
  %11 = vst [vmem:[%s10] sm:$0xff] %v4

// kernel: tile.44
$region0: #{tile.44}
  %s0 = inlined_call_operand.vmem [shape: f32[32,4], index: 0, kind: input, shape index: {}]
  %s1 = inlined_call_operand.vmem [shape: f32[1,128], index: 1, kind: output, shape index: {}]
  $region1: #{tile.44} parent=0
    #allocation0 [shape = 'u8[4096]{0}', space=vmem, size = 0x1000, scoped, tag = 'scoped mem for output reshape']
    %v2 = vld [vmem:[%s0] sm:$0x1]
    %vm3 = vcmask 31744
    %4 = vst.msk [vmem:[#allocation0] sm:$0x1] %vm3, %v2
    %s5 = scalar_lea.vmem %s0, 31
    %v6 = vld [vmem:[%s5] sm:$0x1]
    %7 = vrot.lane.b32.xlu0 %v6, 124
    %v8 = vpop.permute.xlu0 %7
    %vm9 = vcmask 1048544
    %10 = vst.msk [vmem:[#allocation0] sm:$0x1] %vm9, %v8
    %s11 = scalar_lea.vmem %s0, 30
    %v12 = vld [vmem:[%s11] sm:$0x1]
    %13 = vrot.lane.b32.xlu0 %v12, 120
    %v14 = vpop.permute.xlu0 %13
    %vm15 = vcmask 1015744
    %16 = vst.msk [vmem:[#allocation0] sm:$0x1] %vm15, %v14
    %s17 = scalar_lea.vmem %s0, 29
    %v18 = vld [vmem:[%s17] sm:$0x1]
    %19 = vrot.lane.b32.xlu0 %v18, 116
    %v20 = vpop.permute.xlu0 %19
    %vm21 = vcmask 982944
    %22 = vst.msk [vmem:[#allocation0] sm:$0x1] %vm21, %v20
    %s23 = scalar_lea.vmem %s0, 28
    %v24 = vld [vmem:[%s23] sm:$0x1]
    %25 = vrot.lane.b32.xlu0 %v24, 112
    %v26 = vpop.permute.xlu0 %25
    %vm27 = vcmask 950144
    %28 = vst.msk [vmem:[#allocation0] sm:$0x1] %vm27, %v26
    %s29 = scalar_lea.vmem %s0, 27
    %v30 = vld [vmem:[%s29] sm:$0x1]
    %31 = vrot.lane.b32.xlu0 %v30, 108
    %v32 = vpop.permute.xlu0 %31
    %vm33 = vcmask 917344
    %34 = vst.msk [vmem:[#allocation0] sm:$0x1] %vm33, %v32
    %s35 = scalar_lea.vmem %s0, 26
    %v36 = vld [vmem:[%s35] sm:$0x1]
    %37 = vrot.lane.b32.xlu0 %v36, 104
    %v38 = vpop.permute.xlu0 %37
    %vm39 = vcmask 884544
    %40 = vst.msk [vmem:[#allocation0] sm:$0x1] %vm39, %v38
    %s41 = scalar_lea.vmem %s0, 25
    %v42 = vld [vmem:[%s41] sm:$0x1]
    %43 = vrot.lane.b32.xlu0 %v42, 100
    %v44 = vpop.permute.xlu0 %43
    %vm45 = vcmask 851744
    %46 = vst.msk [vmem:[#allocation0] sm:$0x1] %vm45, %v44
    %s47 = scalar_lea.vmem %s0, 24
    %v48 = vld [vmem:[%s47] sm:$0x1]
    %49 = vrot.lane.b32.xlu0 %v48, 96
    %v50 = vpop.permute.xlu0 %49
    %vm51 = vcmask 818944
    %52 = vst.msk [vmem:[#allocation0] sm:$0x1] %vm51, %v50
    %s53 = scalar_lea.vmem %s0, 23
    %v54 = vld [vmem:[%s53] sm:$0x1]
    %55 = vrot.lane.b32.xlu0 %v54, 92
    %v56 = vpop.permute.xlu0 %55
    %vm57 = vcmask 786144
    %58 = vst.msk [vmem:[#allocation0] sm:$0x1] %vm57, %v56
    %s59 = scalar_lea.vmem %s0, 22
    %v60 = vld [vmem:[%s59] sm:$0x1]
    %61 = vrot.lane.b32.xlu0 %v60, 88
    %v62 = vpop.permute.xlu0 %61
    %vm63 = vcmask 753344
    %64 = vst.msk [vmem:[#allocation0] sm:$0x1] %vm63, %v62
    %s65 = scalar_lea.vmem %s0, 21
    %v66 = vld [vmem:[%s65] sm:$0x1]
    %67 = vrot.lane.b32.xlu0 %v66, 84
    %v68 = vpop.permute.xlu0 %67
    %vm69 = vcmask 720544
    %70 = vst.msk [vmem:[#allocation0] sm:$0x1] %vm69, %v68
    %s71 = scalar_lea.vmem %s0, 20
    %v72 = vld [vmem:[%s71] sm:$0x1]
    %73 = vrot.lane.b32.xlu0 %v72, 80
    %v74 = vpop.permute.xlu0 %73
    %vm75 = vcmask 687744
    %76 = vst.msk [vmem:[#allocation0] sm:$0x1] %vm75, %v74
    %s77 = scalar_lea.vmem %s0, 19
    %v78 = vld [vmem:[%s77] sm:$0x1]
    %79 = vrot.lane.b32.xlu0 %v78, 76
    %v80 = vpop.permute.xlu0 %79
    %vm81 = vcmask 654944
    %82 = vst.msk [vmem:[#allocation0] sm:$0x1] %vm81, %v80
    %s83 = scalar_lea.vmem %s0, 18
    %v84 = vld [vmem:[%s83] sm:$0x1]
    %85 = vrot.lane.b32.xlu0 %v84, 72
    %v86 = vpop.permute.xlu0 %85
    %vm87 = vcmask 622144
    %88 = vst.msk [vmem:[#allocation0] sm:$0x1] %vm87, %v86
    %s89 = scalar_lea.vmem %s0, 17
    %v90 = vld [vmem:[%s89] sm:$0x1]
    %91 = vrot.lane.b32.xlu0 %v90, 68
    %v92 = vpop.permute.xlu0 %91
    %vm93 = vcmask 589344
    %94 = vst.msk [vmem:[#allocation0] sm:$0x1] %vm93, %v92
    %s95 = scalar_lea.vmem %s0, 16
    %v96 = vld [vmem:[%s95] sm:$0x1]
    %97 = vrot.lane.b32.xlu0 %v96, 64
    %v98 = vpop.permute.xlu0 %97
    %vm99 = vcmask 556544
    %100 = vst.msk [vmem:[#allocation0] sm:$0x1] %vm99, %v98
    %s101 = scalar_lea.vmem %s0, 15
    %v102 = vld [vmem:[%s101] sm:$0x1]
    %103 = vrot.lane.b32.xlu0 %v102, 60
    %v104 = vpop.permute.xlu0 %103
    %vm105 = vcmask 523744
    %106 = vst.msk [vmem:[#allocation0] sm:$0x1] %vm105, %v104
    %s107 = scalar_lea.vmem %s0, 14
    %v108 = vld [vmem:[%s107] sm:$0x1]
    %109 = vrot.lane.b32.xlu0 %v108, 56
    %v110 = vpop.permute.xlu0 %109
    %vm111 = vcmask 490944
    %112 = vst.msk [vmem:[#allocation0] sm:$0x1] %vm111, %v110
    %s113 = scalar_lea.vmem %s0, 13
    %v114 = vld [vmem:[%s113] sm:$0x1]
    %115 = vrot.lane.b32.xlu0 %v114, 52
    %v116 = vpop.permute.xlu0 %115
    %vm117 = vcmask 458144
    %118 = vst.msk [vmem:[#allocation0] sm:$0x1] %vm117, %v116
    %s119 = scalar_lea.vmem %s0, 12
    %v120 = vld [vmem:[%s119] sm:$0x1]
    %121 = vrot.lane.b32.xlu0 %v120, 48
    %v122 = vpop.permute.xlu0 %121
    %vm123 = vcmask 425344
    %124 = vst.msk [vmem:[#allocation0] sm:$0x1] %vm123, %v122
    %s125 = scalar_lea.vmem %s0, 11
    %v126 = vld [vmem:[%s125] sm:$0x1]
    %127 = vrot.lane.b32.xlu0 %v126, 44
    %v128 = vpop.permute.xlu0 %127
    %vm129 = vcmask 392544
    %130 = vst.msk [vmem:[#allocation0] sm:$0x1] %vm129, %v128
    %s131 = scalar_lea.vmem %s0, 10
    %v132 = vld [vmem:[%s131] sm:$0x1]
    %133 = vrot.lane.b32.xlu0 %v132, 40
    %v134 = vpop.permute.xlu0 %133
    %vm135 = vcmask 359744
    %136 = vst.msk [vmem:[#allocation0] sm:$0x1] %vm135, %v134
    %s137 = scalar_lea.vmem %s0, 9
    %v138 = vld [vmem:[%s137] sm:$0x1]
    %139 = vrot.lane.b32.xlu0 %v138, 36
    %v140 = vpop.permute.xlu0 %139
    %vm141 = vcmask 326944
    %142 = vst.msk [vmem:[#allocation0] sm:$0x1] %vm141, %v140
    %s143 = scalar_lea.vmem %s0, 8
    %v144 = vld [vmem:[%s143] sm:$0x1]
    %145 = vrot.lane.b32.xlu0 %v144, 32
    %v146 = vpop.permute.xlu0 %145
    %vm147 = vcmask 294144
    %148 = vst.msk [vmem:[#allocation0] sm:$0x1] %vm147, %v146
    %s149 = scalar_lea.vmem %s0, 7
    %v150 = vld [vmem:[%s149] sm:$0x1]
    %151 = vrot.lane.b32.xlu0 %v150, 28
    %v152 = vpop.permute.xlu0 %151
    %vm153 = vcmask 261344
    %154 = vst.msk [vmem:[#allocation0] sm:$0x1] %vm153, %v152
    %s155 = scalar_lea.vmem %s0, 6
    %v156 = vld [vmem:[%s155] sm:$0x1]
    %157 = vrot.lane.b32.xlu0 %v156, 24
    %v158 = vpop.permute.xlu0 %157
    %vm159 = vcmask 228544
    %160 = vst.msk [vmem:[#allocation0] sm:$0x1] %vm159, %v158
    %s161 = scalar_lea.vmem %s0, 5
    %v162 = vld [vmem:[%s161] sm:$0x1]
    %163 = vrot.lane.b32.xlu0 %v162, 20
    %v164 = vpop.permute.xlu0 %163
    %vm165 = vcmask 195744
    %166 = vst.msk [vmem:[#allocation0] sm:$0x1] %vm165, %v164
    %s167 = scalar_lea.vmem %s0, 4
    %v168 = vld [vmem:[%s167] sm:$0x1]
    %169 = vrot.lane.b32.xlu0 %v168, 16
    %v170 = vpop.permute.xlu0 %169
    %vm171 = vcmask 162944
    %172 = vst.msk [vmem:[#allocation0] sm:$0x1] %vm171, %v170
    %s173 = scalar_lea.vmem %s0, 3
    %v174 = vld [vmem:[%s173] sm:$0x1]
    %175 = vrot.lane.b32.xlu0 %v174, 12
    %v176 = vpop.permute.xlu0 %175
    %vm177 = vcmask 130144
    %178 = vst.msk [vmem:[#allocation0] sm:$0x1] %vm177, %v176
    %s179 = scalar_lea.vmem %s0, 2
    %v180 = vld [vmem:[%s179] sm:$0x1]
    %181 = vrot.lane.b32.xlu0 %v180, 8
    %v182 = vpop.permute.xlu0 %181
    %vm183 = vcmask 97344
    %184 = vst.msk [vmem:[#allocation0] sm:$0x1] %vm183, %v182
    %s185 = scalar_lea.vmem %s0, 1
    %v186 = vld [vmem:[%s185] sm:$0x1]
    %187 = vrot.lane.b32.xlu0 %v186, 4
    %v188 = vpop.permute.xlu0 %187
    %vm189 = vcmask 64544
    %190 = vst.msk [vmem:[#allocation0] sm:$0x1] %vm189, %v188
    %s192 = sshllo.u32 0, 1
    %v194 = vld [vmem:[#allocation0] sm:%s192]
    %s195 = sshllo.u32 0, 1
    %196 = vst [vmem:[%s1] sm:%s195] %v194

// kernel: _upblock_forward.4
$region0: #{_upblock_forward.4}
  #allocation0 [shape = 'u32[]', space=smem, size = 0x4, offset = 0x4, fixed_abs, tag = 'smem constant byte address 0x4 - core index']
  #allocation1 [shape = 'u32[144,128]{1,0:T(1,128)}', space=vmem, size = 0x12000, scoped, tag = 'internal scratch']
  #allocation2 [shape = 'f32[10,64]{1,0:T(8,128)}', space=vmem, size = 0x2000, scoped, tag = 'scratch operand']
  #allocation3 [shape = 'f32[10,64]{1,0:T(8,128)}', space=vmem, size = 0x2000, scoped, tag = 'scratch operand']
  %s0 = inlined_call_operand.vmem [shape: f32[2,8,64], index: 0, kind: input, shape index: {}]
  %s1 = inlined_call_operand.vmem [shape: f32[2,2,8,64], index: 1, kind: input, shape index: {}]
  %s2 = inlined_call_operand.vmem [shape: f32[2,64,64], index: 2, kind: input, shape index: {}]
  %s3 = inlined_call_operand.vmem [shape: f32[2,1,64], index: 3, kind: input, shape index: {}]
  %s4 = inlined_call_operand.vmem [shape: f32[1,64], index: 4, kind: input, shape index: {}]
  %s5 = inlined_call_operand.vmem [shape: f32[1,64], index: 5, kind: input, shape index: {}]
  %s6 = inlined_call_operand.vmem [shape: f32[5,64,64], index: 6, kind: input, shape index: {}]
  %s7 = inlined_call_operand.vmem [shape: f32[1,64], index: 7, kind: input, shape index: {}]
  %s8 = inlined_call_operand.vmem [shape: f32[2,2,8,64], index: 8, kind: output, shape index: {0}]
  %s9 = inlined_call_operand.vmem [shape: f32[2,1,64], index: 9, kind: output, shape index: {1}]
  %s10 = inlined_call_operand.vmem [shape: f32[2,1,64], index: 10, kind: output, shape index: {2}]
  %11 = xla_tuple %s8, %s9, %s10
  %s12 = sld [smem:[#allocation0]]
  $region81: #{_upblock_forward.4} parent=0
    _
  %s14 = ssub.s32 1, %s12
  %s15 = scalar_select 0, %s14, %s12
  loop: start=0, step=1, limit=4
  $region2: #{_upblock_forward.4} parent=0 // loop_pre_header
    _
  $region3: #{_upblock_forward.4} parent=0 // loop_header
    %s17 = sphi 0, %s21
    %p18 = scmp.ge.s32.totalorder %s17, 4
    %s27 = sphi 0, %s29
    %s30 = sphi 0, %s27
    %s31 = sphi 0, %s30
    %s47 = sphi 0, %s31
    %s53 = sphi 0, %s55
    %s56 = sphi 0, %s53
    %s57 = sphi 0, %s56
    %s73 = sphi 0, %s57
    %s77 = sphi 0, %s77
    %s79 = sphi 0, %s77
    %s80 = sphi 0, %s79
    %s94 = sphi 0, %s80
    %s98 = sphi 0, %s98
    %s100 = sphi 0, %s98
    %s101 = sphi 0, %s100
    %s115 = sphi 0, %s101
    %s119 = sphi 0, %s119
    %s121 = sphi 0, %s119
    %s122 = sphi 0, %s121
    %s136 = sphi 0, %s122
    %s140 = sphi 0, %s140
    %s142 = sphi 0, %s140
    %s143 = sphi 0, %s142
    %s157 = sphi 0, %s143
    %s161 = sphi 0, %s161
    %s163 = sphi 0, %s161
    %s164 = sphi 0, %s163
    %s178 = sphi 0, %s164
    %s182 = sphi 0, %s182
    %s184 = sphi 0, %s182
    %s185 = sphi 0, %s184
    %s199 = sphi 0, %s185
    %s205 = sphi 0, %s207
    %s208 = sphi 0, %s205
    %s209 = sphi 0, %s208
    %s225 = sphi 0, %s209
    %s231 = sphi 0, %s233
    %s234 = sphi 0, %s231
    %s235 = sphi 0, %s234
    %s251 = sphi 0, %s235
    %s257 = sphi 0, %s259
    %s260 = sphi 0, %s257
    %s261 = sphi 0, %s260
    %s277 = sphi 0, %s261
  $region4: #{_upblock_forward.4} parent=0 // loop_header_branch
    %20 = sbr.rel (%p18) target = $region8
  $region5: #{_upblock_forward.4} parent=0 // loop_body
    %s22 = ssub.s32 %s17, 1
    %s23 = ssub.s32 %s17, 2
    %s24 = sadd.s32 %s17, 1
    %s25 = ssub.s32 %s17, %s24
    %p26 = scmp.eq.s32.totalorder %s25, 0
    %s28 = sadd.s32 %s27, 1
    %s29 = scalar_select %p26, %s27, %s28
    %p32 = pneg %p26
    %p33 = scmp.eq.s32.totalorder %s17, 1
    %p34 = por %p32, %p33
    %p35 = scmp.ne.s32.totalorder %s27, %s30
    %p36 = scmp.eq.s32.totalorder %s17, 0
    %p37 = por %p35, %p36
    %p38 = scmp.ne.s32.totalorder %s27, %s30
    %p39 = scmp.eq.s32.totalorder %s22, 1
    %p40 = por %p38, %p39
    %p41 = scmp.ne.s32.totalorder %s30, %s31
    %p42 = scmp.eq.s32.totalorder %s22, 0
    %p43 = por %p41, %p42
    %p44 = scmp.ne.s32.totalorder %s30, %s31
    %p45 = scmp.eq.s32.totalorder %s23, 1
    %p46 = por %p44, %p45
    %p48 = scmp.ne.s32.totalorder %s31, %s47
    %p49 = scmp.eq.s32.totalorder %s23, 0
    %p50 = por %p48, %p49
    %s51 = ssub.s32 %s17, %s24
    %p52 = scmp.eq.s32.totalorder %s51, 0
    %s54 = sadd.s32 %s53, 1
    %s55 = scalar_select %p52, %s53, %s54
    %p58 = pneg %p52
    %p59 = scmp.eq.s32.totalorder %s17, 1
    %p60 = por %p58, %p59
    %p61 = scmp.ne.s32.totalorder %s53, %s56
    %p62 = scmp.eq.s32.totalorder %s17, 0
    %p63 = por %p61, %p62
    %p64 = scmp.ne.s32.totalorder %s53, %s56
    %p65 = scmp.eq.s32.totalorder %s22, 1
    %p66 = por %p64, %p65
    %p67 = scmp.ne.s32.totalorder %s56, %s57
    %p68 = scmp.eq.s32.totalorder %s22, 0
    %p69 = por %p67, %p68
    %p70 = scmp.ne.s32.totalorder %s56, %s57
    %p71 = scmp.eq.s32.totalorder %s23, 1
    %p72 = por %p70, %p71
    %p74 = scmp.ne.s32.totalorder %s57, %s73
    %p75 = scmp.eq.s32.totalorder %s23, 0
    %p76 = por %p74, %p75
    %s78 = sadd.s32 %s77, 1
    %p81 = scmp.eq.s32.totalorder %s17, 1
    %p82 = scmp.ne.s32.totalorder %s77, %s79
    %p83 = scmp.eq.s32.totalorder %s17, 0
    %p84 = por %p82, %p83
    %p85 = scmp.ne.s32.totalorder %s77, %s79
    %p86 = scmp.eq.s32.totalorder %s22, 1
    %p87 = por %p85, %p86
    %p88 = scmp.ne.s32.totalorder %s79, %s80
    %p89 = scmp.eq.s32.totalorder %s22, 0
    %p90 = por %p88, %p89
    %p91 = scmp.ne.s32.totalorder %s79, %s80
    %p92 = scmp.eq.s32.totalorder %s23, 1
    %p93 = por %p91, %p92
    %p95 = scmp.ne.s32.totalorder %s80, %s94
    %p96 = scmp.eq.s32.totalorder %s23, 0
    %p97 = por %p95, %p96
    %s99 = sadd.s32 %s98, 1
    %p102 = scmp.eq.s32.totalorder %s17, 1
    %p103 = scmp.ne.s32.totalorder %s98, %s100
    %p104 = scmp.eq.s32.totalorder %s17, 0
    %p105 = por %p103, %p104
    %p106 = scmp.ne.s32.totalorder %s98, %s100
    %p107 = scmp.eq.s32.totalorder %s22, 1
    %p108 = por %p106, %p107
    %p109 = scmp.ne.s32.totalorder %s100, %s101
    %p110 = scmp.eq.s32.totalorder %s22, 0
    %p111 = por %p109, %p110
    %p112 = scmp.ne.s32.totalorder %s100, %s101
    %p113 = scmp.eq.s32.totalorder %s23, 1
    %p114 = por %p112, %p113
    %p116 = scmp.ne.s32.totalorder %s101, %s115
    %p117 = scmp.eq.s32.totalorder %s23, 0
    %p118 = por %p116, %p117
    %s120 = sadd.s32 %s119, 1
    %p123 = scmp.eq.s32.totalorder %s17, 1
    %p124 = scmp.ne.s32.totalorder %s119, %s121
    %p125 = scmp.eq.s32.totalorder %s17, 0
    %p126 = por %p124, %p125
    %p127 = scmp.ne.s32.totalorder %s119, %s121
    %p128 = scmp.eq.s32.totalorder %s22, 1
    %p129 = por %p127, %p128
    %p130 = scmp.ne.s32.totalorder %s121, %s122
    %p131 = scmp.eq.s32.totalorder %s22, 0
    %p132 = por %p130, %p131
    %p133 = scmp.ne.s32.totalorder %s121, %s122
    %p134 = scmp.eq.s32.totalorder %s23, 1
    %p135 = por %p133, %p134
    %p137 = scmp.ne.s32.totalorder %s122, %s136
    %p138 = scmp.eq.s32.totalorder %s23, 0
    %p139 = por %p137, %p138
    %s141 = sadd.s32 %s140, 1
    %p144 = scmp.eq.s32.totalorder %s17, 1
    %p145 = scmp.ne.s32.totalorder %s140, %s142
    %p146 = scmp.eq.s32.totalorder %s17, 0
    %p147 = por %p145, %p146
    %p148 = scmp.ne.s32.totalorder %s140, %s142
    %p149 = scmp.eq.s32.totalorder %s22, 1
    %p150 = por %p148, %p149
    %p151 = scmp.ne.s32.totalorder %s142, %s143
    %p152 = scmp.eq.s32.totalorder %s22, 0
    %p153 = por %p151, %p152
    %p154 = scmp.ne.s32.totalorder %s142, %s143
    %p155 = scmp.eq.s32.totalorder %s23, 1
    %p156 = por %p154, %p155
    %p158 = scmp.ne.s32.totalorder %s143, %s157
    %p159 = scmp.eq.s32.totalorder %s23, 0
    %p160 = por %p158, %p159
    %s162 = sadd.s32 %s161, 1
    %p165 = scmp.eq.s32.totalorder %s17, 1
    %p166 = scmp.ne.s32.totalorder %s161, %s163
    %p167 = scmp.eq.s32.totalorder %s17, 0
    %p168 = por %p166, %p167
    %p169 = scmp.ne.s32.totalorder %s161, %s163
    %p170 = scmp.eq.s32.totalorder %s22, 1
    %p171 = por %p169, %p170
    %p172 = scmp.ne.s32.totalorder %s163, %s164
    %p173 = scmp.eq.s32.totalorder %s22, 0
    %p174 = por %p172, %p173
    %p175 = scmp.ne.s32.totalorder %s163, %s164
    %p176 = scmp.eq.s32.totalorder %s23, 1
    %p177 = por %p175, %p176
    %p179 = scmp.ne.s32.totalorder %s164, %s178
    %p180 = scmp.eq.s32.totalorder %s23, 0
    %p181 = por %p179, %p180
    %s183 = sadd.s32 %s182, 1
    %p186 = scmp.eq.s32.totalorder %s17, 1
    %p187 = scmp.ne.s32.totalorder %s182, %s184
    %p188 = scmp.eq.s32.totalorder %s17, 0
    %p189 = por %p187, %p188
    %p190 = scmp.ne.s32.totalorder %s182, %s184
    %p191 = scmp.eq.s32.totalorder %s22, 1
    %p192 = por %p190, %p191
    %p193 = scmp.ne.s32.totalorder %s184, %s185
    %p194 = scmp.eq.s32.totalorder %s22, 0
    %p195 = por %p193, %p194
    %p196 = scmp.ne.s32.totalorder %s184, %s185
    %p197 = scmp.eq.s32.totalorder %s23, 1
    %p198 = por %p196, %p197
    %p200 = scmp.ne.s32.totalorder %s185, %s199
    %p201 = scmp.eq.s32.totalorder %s23, 0
    %p202 = por %p200, %p201
    %s203 = ssub.s32 %s17, %s24
    %p204 = scmp.eq.s32.totalorder %s203, 0
    %s206 = sadd.s32 %s205, 1
    %s207 = scalar_select %p204, %s205, %s206
    %p210 = pneg %p204
    %p211 = scmp.eq.s32.totalorder %s17, 1
    %p212 = por %p210, %p211
    %p213 = scmp.ne.s32.totalorder %s205, %s208
    %p214 = scmp.eq.s32.totalorder %s17, 0
    %p215 = por %p213, %p214
    %p216 = scmp.ne.s32.totalorder %s205, %s208
    %p217 = scmp.eq.s32.totalorder %s22, 1
    %p218 = por %p216, %p217
    %p219 = scmp.ne.s32.totalorder %s208, %s209
    %p220 = scmp.eq.s32.totalorder %s22, 0
    %p221 = por %p219, %p220
    %p222 = scmp.ne.s32.totalorder %s208, %s209
    %p223 = scmp.eq.s32.totalorder %s23, 1
    %p224 = por %p222, %p223
    %p226 = scmp.ne.s32.totalorder %s209, %s225
    %p227 = scmp.eq.s32.totalorder %s23, 0
    %p228 = por %p226, %p227
    %s229 = ssub.s32 %s17, %s24
    %p230 = scmp.eq.s32.totalorder %s229, 0
    %s232 = sadd.s32 %s231, 1
    %s233 = scalar_select %p230, %s231, %s232
    %p236 = pneg %p230
    %p237 = scmp.eq.s32.totalorder %s17, 1
    %p238 = por %p236, %p237
    %p239 = scmp.ne.s32.totalorder %s231, %s234
    %p240 = scmp.eq.s32.totalorder %s17, 0
    %p241 = por %p239, %p240
    %p242 = scmp.ne.s32.totalorder %s231, %s234
    %p243 = scmp.eq.s32.totalorder %s22, 1
    %p244 = por %p242, %p243
    %p245 = scmp.ne.s32.totalorder %s234, %s235
    %p246 = scmp.eq.s32.totalorder %s22, 0
    %p247 = por %p245, %p246
    %p248 = scmp.ne.s32.totalorder %s234, %s235
    %p249 = scmp.eq.s32.totalorder %s23, 1
    %p250 = por %p248, %p249
    %p252 = scmp.ne.s32.totalorder %s235, %s251
    %p253 = scmp.eq.s32.totalorder %s23, 0
    %p254 = por %p252, %p253
    %s255 = ssub.s32 %s17, %s24
    %p256 = scmp.eq.s32.totalorder %s255, 0
    %s258 = sadd.s32 %s257, 1
    %s259 = scalar_select %p256, %s257, %s258
    %p262 = pneg %p256
    %p263 = scmp.eq.s32.totalorder %s17, 1
    %p264 = por %p262, %p263
    %p265 = scmp.ne.s32.totalorder %s257, %s260
    %p266 = scmp.eq.s32.totalorder %s17, 0
    %p267 = por %p265, %p266
    %p268 = scmp.ne.s32.totalorder %s257, %s260
    %p269 = scmp.eq.s32.totalorder %s22, 1
    %p270 = por %p268, %p269
    %p271 = scmp.ne.s32.totalorder %s260, %s261
    %p272 = scmp.eq.s32.totalorder %s22, 0
    %p273 = por %p271, %p272
    %p274 = scmp.ne.s32.totalorder %s260, %s261
    %p275 = scmp.eq.s32.totalorder %s23, 1
    %p276 = por %p274, %p275
    %p278 = scmp.ne.s32.totalorder %s261, %s277
    %p279 = scmp.eq.s32.totalorder %s23, 0
    %p280 = por %p278, %p279
    %p281 = scmp.le.s32.totalorder 1, %s17
    %p282 = scmp.lt.s32.totalorder %s17, 3
    %p283 = pnand %p281, %p282
    %p284 = pneg %p283
    // Predicated region
    $region9: #{_upblock_forward.4} parent=5 // pred_check
      _
    $region10: #{_upblock_forward.4} parent=5 // pred_check_branch
      %286 = sbr.rel (%p283) target = $region12
    $region11: #{_upblock_forward.4} parent=5 // pred_region
      %s287 = ssub.s32 %s17, 1
      // Predicated region
      $region13: #{_upblock_forward.4} parent=11 // pred_check
        %p288 = pneg %p90
      $region14: #{_upblock_forward.4} parent=11 // pred_check_branch
        %290 = sbr.rel (%p288) target = $region16
      $region15: #{_upblock_forward.4} parent=11 // pred_region
        _
      $region16: #{_upblock_forward.4} parent=11 // pred_fallthru
        _
      // Predicated region
      $region17: #{_upblock_forward.4} parent=11 // pred_check
        %p291 = pneg %p111
      $region18: #{_upblock_forward.4} parent=11 // pred_check_branch
        %293 = sbr.rel (%p291) target = $region20
      $region19: #{_upblock_forward.4} parent=11 // pred_region
        _
      $region20: #{_upblock_forward.4} parent=11 // pred_fallthru
        _
      // Predicated region
      $region21: #{_upblock_forward.4} parent=11 // pred_check
        %p294 = pneg %p132
      $region22: #{_upblock_forward.4} parent=11 // pred_check_branch
        %296 = sbr.rel (%p294) target = $region24
      $region23: #{_upblock_forward.4} parent=11 // pred_region
        _
      $region24: #{_upblock_forward.4} parent=11 // pred_fallthru
        _
      // Predicated region
      $region25: #{_upblock_forward.4} parent=11 // pred_check
        %p297 = pneg %p153
      $region26: #{_upblock_forward.4} parent=11 // pred_check_branch
        %299 = sbr.rel (%p297) target = $region28
      $region27: #{_upblock_forward.4} parent=11 // pred_region
        _
      $region28: #{_upblock_forward.4} parent=11 // pred_fallthru
        _
      // Predicated region
      $region29: #{_upblock_forward.4} parent=11 // pred_check
        %p300 = pneg %p174
      $region30: #{_upblock_forward.4} parent=11 // pred_check_branch
        %302 = sbr.rel (%p300) target = $region32
      $region31: #{_upblock_forward.4} parent=11 // pred_region
        _
      $region32: #{_upblock_forward.4} parent=11 // pred_fallthru
        _
      // Predicated region
      $region33: #{_upblock_forward.4} parent=11 // pred_check
        %p303 = pneg %p195
      $region34: #{_upblock_forward.4} parent=11 // pred_check_branch
        %305 = sbr.rel (%p303) target = $region36
      $region35: #{_upblock_forward.4} parent=11 // pred_region
        _
      $region36: #{_upblock_forward.4} parent=11 // pred_fallthru
        _
    $region12: #{_upblock_forward.4} parent=5 // pred_fallthru
      _
    %p306 = scmp.lt.s32.totalorder %s17, 2
    // Predicated region
    $region37: #{_upblock_forward.4} parent=5 // pred_check
      %p307 = pneg %p306
    $region38: #{_upblock_forward.4} parent=5 // pred_check_branch
      %309 = sbr.rel (%p307) target = $region40
    $region39: #{_upblock_forward.4} parent=5 // pred_region
      // Predicated region
      $region41: #{_upblock_forward.4} parent=39 // pred_check
        %p310 = pneg %p37
      $region42: #{_upblock_forward.4} parent=39 // pred_check_branch
        %312 = sbr.rel (%p310) target = $region44
      $region43: #{_upblock_forward.4} parent=39 // pred_region
        %p313 = scmp.lt.s32.totalorder %s17, 1
        %s314 = scalar_select %p313, %s17, 1
        %s315 = smul.addr %s314, 8
        %s316 = scalar_lea.vmem %s0, %s315
      $region44: #{_upblock_forward.4} parent=39 // pred_fallthru
        _
      // Predicated region
      $region45: #{_upblock_forward.4} parent=39 // pred_check
        %p317 = pneg %p63
      $region46: #{_upblock_forward.4} parent=39 // pred_check_branch
        %319 = sbr.rel (%p317) target = $region48
      $region47: #{_upblock_forward.4} parent=39 // pred_region
        %p320 = scmp.lt.s32.totalorder %s17, 1
        %s321 = scalar_select %p320, %s17, 1
        %s322 = smul.addr %s321, 2
        %s323 = smul.addr %s322, 8
        %s324 = scalar_lea.vmem %s1, %s323
      $region48: #{_upblock_forward.4} parent=39 // pred_fallthru
        _
    $region40: #{_upblock_forward.4} parent=5 // pred_fallthru
      _
    %p325 = scmp.le.s32.totalorder 1, %s17
    %p326 = scmp.lt.s32.totalorder %s17, 3
    %p327 = pnand %p325, %p326
    %p328 = pneg %p327
    // Predicated region
    $region49: #{_upblock_forward.4} parent=5 // pred_check
      _
    $region50: #{_upblock_forward.4} parent=5 // pred_check_branch
      %330 = sbr.rel (%p327) target = $region52
    $region51: #{_upblock_forward.4} parent=5 // pred_region
      %s331 = ssub.s32 %s17, 1
      %p332 = scmp.lt.s32.totalorder %s22, 1
      %s333 = scalar_select %p332, %s22, 1
      %s334 = smul.addr %s333, 8
      %s335 = scalar_lea.vmem %s0, %s334
      %p336 = pneg %p43
      %p337 = pneg %p40
      %p338 = scmp.lt.s32.totalorder %s22, 1
      %s339 = scalar_select %p338, %s22, 1
      %s340 = smul.addr %s339, 2
      %s341 = smul.addr %s340, 8
      %s342 = scalar_lea.vmem %s1, %s341
      %p343 = pneg %p69
      %p344 = pneg %p66
      %p345 = pneg %p90
      %p346 = pneg %p87
      %p347 = pneg %p111
      %p348 = pneg %p108
      %p349 = pneg %p132
      %p350 = pneg %p129
      %p351 = pneg %p153
      %p352 = pneg %p150
      %p353 = pneg %p174
      %p354 = pneg %p171
      %p355 = pneg %p195
      %p356 = pneg %p192
      %p357 = pneg %p221
      %p358 = pneg %p218
      %p359 = scmp.lt.s32.totalorder %s22, 1
      %s360 = scalar_select %p359, %s22, 1
      %s361 = smul.addr %s360, 2
      %s362 = smul.addr %s361, 8
      %s363 = scalar_lea.vmem %s8, %s362
      %p364 = pneg %p247
      %p365 = pneg %p244
      %p366 = scmp.lt.s32.totalorder %s22, 1
      %s367 = scalar_select %p366, %s22, 1
      %s368 = scalar_lea.vmem %s9, %s367
      %p369 = pneg %p273
      %p370 = pneg %p270
      %p371 = scmp.lt.s32.totalorder %s22, 1
      %s372 = scalar_select %p371, %s22, 1
      %s373 = scalar_lea.vmem %s10, %s372
      %p374 = scmp.lt.s32.totalorder %s22, 1
      %s375 = scalar_select %p374, %s22, 1
      %s376 = smul.addr %s375, 8
      %s377 = scalar_lea.vmem %s0, %s376
      %p378 = scmp.lt.s32.totalorder %s22, 1
      %s379 = scalar_select %p378, %s22, 1
      %s380 = smul.addr %s379, 2
      %s381 = smul.addr %s380, 8
      %s382 = scalar_lea.vmem %s1, %s381
      %p383 = scmp.lt.s32.totalorder %s22, 1
      %s384 = scalar_select %p383, %s22, 1
      %s385 = smul.addr %s384, 2
      %s386 = smul.addr %s385, 8
      %s387 = scalar_lea.vmem %s8, %s386
      %p388 = scmp.lt.s32.totalorder %s22, 1
      %s389 = scalar_select %p388, %s22, 1
      %s390 = scalar_lea.vmem %s9, %s389
      %p391 = scmp.lt.s32.totalorder %s22, 1
      %s392 = scalar_select %p391, %s22, 1
      %s393 = scalar_lea.vmem %s10, %s392
      %v394 = vld [vmem:[%s377] sm:$0xff]
      %v395 = vld [vmem:[%s2] sm:$0xff]
      %v396 = vld [vmem:[%s2 + $0x8] sm:$0xff]
      %v397 = vld [vmem:[%s2 + $0x10] sm:$0xff]
      %v398 = vld [vmem:[%s2 + $0x18] sm:$0xff]
      %v399 = vld [vmem:[%s2 + $0x20] sm:$0xff]
      %v400 = vld [vmem:[%s2 + $0x28] sm:$0xff]
      %v401 = vld [vmem:[%s2 + $0x30] sm:$0xff]
      %v402 = vld [vmem:[%s2 + $0x38] sm:$0xff]
      %v403 = vld [vmem:[%s3] sm:$0x1]
      %v405 = vlaneseq
      %v406 = vshrl.u32 %v405, 7
      %v407 = vsub.s32 0, %v406
      %v408 = vrot.slane %v403, %v407
      %vm410 = vcmask 523264
      %v412 = vsel %vm410, %v394, 0
      %414 = vmatprep.subr.mxu0 0.0
      %415 = vmatpush1.msra.mxu0 %v395
      %416 = vmatprep.subr.mxu0 0.0
      %417 = vmatpush1.msra.mxu0 %v396
      %418 = vmatprep.subr.mxu0 0.0
      %419 = vmatpush1.msra.mxu0 %v397
      %420 = vmatprep.subr.mxu0 0.0
      %421 = vmatpush1.msra.mxu0 %v398
      %422 = vmatprep.subr.mxu0 0.0
      %423 = vmatpush1.msra.mxu0 %v399
      %424 = vmatprep.subr.mxu0 0.0
      %425 = vmatpush1.msra.mxu0 %v400
      %426 = vmatprep.subr.mxu0 0.0
      %427 = vmatpush1.msra.mxu0 %v401
      %428 = vmatprep.subr.mxu0 0.0
      %429 = vmatpush1.msra.mxu0 %v402
      %430 = vmatprep.subr.mxu0 0.0
      %431 = vmatpush1.msra.mxu0 0.0
      %432 = vmatprep.subr.mxu0 0.0
      %433 = vmatpush1.msra.mxu0 0.0
      %434 = vmatprep.subr.mxu0 0.0
      %435 = vmatpush1.msra.mxu0 0.0
      %436 = vmatprep.subr.mxu0 0.0
      %437 = vmatpush1.msra.mxu0 0.0
      %438 = vmatprep.subr.mxu0 0.0
      %439 = vmatpush1.msra.mxu0 0.0
      %440 = vmatprep.subr.mxu0 0.0
      %441 = vmatpush1.msra.mxu0 0.0
      %442 = vmatprep.subr.mxu0 0.0
      %443 = vmatpush1.msra.mxu0 0.0
      %444 = vmatprep.subr.mxu0 0.0
      %445 = vmatpush1.msra.mxu0 0.0
      %446 = vmatprep.subr.mxu0 0.0
      %447 = vmatpush1.msra.mxu0 0.0
      %448 = vmatprep.subr.mxu0 0.0
      %449 = vmatpush1.msra.mxu0 0.0
      %450 = vmatprep.subr.mxu0 0.0
      %451 = vmatpush1.msra.mxu0 0.0
      %452 = vmatprep.subr.mxu0 0.0
      %453 = vmatpush1.msra.mxu0 0.0
      %454 = vmatprep.subr.mxu0 0.0
      %455 = vmatpush1.msra.mxu0 0.0
      %456 = vmatprep.subr.mxu0 0.0
      %457 = vmatpush1.msra.mxu0 0.0
      %458 = vmatprep.subr.mxu0 0.0
      %459 = vmatpush1.msra.mxu0 0.0
      %460 = vmatprep.subr.mxu0 0.0
      %461 = vmatpush1.msra.mxu0 0.0
      %462 = vmatprep.subr.mxu0 0.0
      %463 = vmatpush1.msra.mxu0 0.0
      %464 = vmatprep.subr.mxu0 0.0
      %465 = vmatpush1.msra.mxu0 0.0
      %466 = vmatprep.subr.mxu0 0.0
      %467 = vmatpush1.msra.mxu0 0.0
      %468 = vmatprep.subr.mxu0 0.0
      %469 = vmatpush1.msra.mxu0 0.0
      %470 = vmatprep.subr.mxu0 0.0
      %471 = vmatpush1.msra.mxu0 0.0
      %472 = vmatprep.subr.mxu0 0.0
      %473 = vmatpush1.msra.mxu0 0.0
      %474 = vmatprep.subr.mxu0 0.0
      %475 = vmatpush1.msra.mxu0 0.0
      %476 = vmatprep.subr.mxu0 0.0
      %477 = vmatpush1.msra.mxu0 0.0
      %478 = vmatprep.mubr.f32.mxu0 0.0
      %479 = vmatmul.mubr.f32.gmra.mrb[0].mxu0 %v412
      %v480 = vpop.f32.mrb[0].mxu0
      %v481 = vadd.f32 %v408, %v480
      %v482 = vpop.f32.mrb[0].mxu0
      %483 = vdwg.mxu0
      %v484 = vmax.f32 %v481, 0.0
      %v485 = vld [vmem:[%s382] sm:$0xff]
      %v486 = vld [vmem:[%s4] sm:$0x1]
      %v488 = vlaneseq
      %v489 = vshrl.u32 %v488, 7
      %v490 = vsub.s32 0, %v489
      %v491 = vrot.slane %v486, %v490
      %v493 = vmul.f32 %v485, %v491
      %v494 = vadd.f32 %v484, %v493
      %v495 = vld [vmem:[%s5] sm:$0x1]
      %v497 = vlaneseq
      %v498 = vshrl.u32 %v497, 7
      %v499 = vsub.s32 0, %v498
      %v500 = vrot.slane %v495, %v499
      %v502 = vadd.f32 %v494, %v500
      %v503 = vmax.f32 %v502, 0.0
      %vm504 = vcmask 516096
      %505 = vst.msk [vmem:[#allocation2] sm:$0x1] %vm504, 0.0
      %506 = vst.msk [vmem:[#allocation2 + $0x1] sm:$0xff] %vm410, %v503
      %507 = vst.msk [vmem:[#allocation2 + $0x9] sm:$0x1] %vm504, 0.0
      %s508 = scalar_lea.vmem %s2, 64
      %v509 = vld [vmem:[%s508] sm:$0xff]
      %v510 = vld [vmem:[%s508 + $0x8] sm:$0xff]
      %v511 = vld [vmem:[%s508 + $0x10] sm:$0xff]
      %v512 = vld [vmem:[%s508 + $0x18] sm:$0xff]
      %v513 = vld [vmem:[%s508 + $0x20] sm:$0xff]
      %v514 = vld [vmem:[%s508 + $0x28] sm:$0xff]
      %v515 = vld [vmem:[%s508 + $0x30] sm:$0xff]
      %v516 = vld [vmem:[%s508 + $0x38] sm:$0xff]
      %s517 = scalar_lea.vmem %s3, 1
      %v518 = vld [vmem:[%s517] sm:$0x1]
      %v520 = vlaneseq
      %v521 = vshrl.u32 %v520, 7
      %v522 = vsub.s32 0, %v521
      %v523 = vrot.slane %v518, %v522
      %525 = vmatprep.subr.mxu0 0.0
      %526 = vmatpush1.msra.mxu0 %v509
      %527 = vmatprep.subr.mxu0 0.0
      %528 = vmatpush1.msra.mxu0 %v510
      %529 = vmatprep.subr.mxu0 0.0
      %530 = vmatpush1.msra.mxu0 %v511
      %531 = vmatprep.subr.mxu0 0.0
      %532 = vmatpush1.msra.mxu0 %v512
      %533 = vmatprep.subr.mxu0 0.0
      %534 = vmatpush1.msra.mxu0 %v513
      %535 = vmatprep.subr.mxu0 0.0
      %536 = vmatpush1.msra.mxu0 %v514
      %537 = vmatprep.subr.mxu0 0.0
      %538 = vmatpush1.msra.mxu0 %v515
      %539 = vmatprep.subr.mxu0 0.0
      %540 = vmatpush1.msra.mxu0 %v516
      %541 = vmatprep.subr.mxu0 0.0
      %542 = vmatpush1.msra.mxu0 0.0
      %543 = vmatprep.subr.mxu0 0.0
      %544 = vmatpush1.msra.mxu0 0.0
      %545 = vmatprep.subr.mxu0 0.0
      %546 = vmatpush1.msra.mxu0 0.0
      %547 = vmatprep.subr.mxu0 0.0
      %548 = vmatpush1.msra.mxu0 0.0
      %549 = vmatprep.subr.mxu0 0.0
      %550 = vmatpush1.msra.mxu0 0.0
      %551 = vmatprep.subr.mxu0 0.0
      %552 = vmatpush1.msra.mxu0 0.0
      %553 = vmatprep.subr.mxu0 0.0
      %554 = vmatpush1.msra.mxu0 0.0
      %555 = vmatprep.subr.mxu0 0.0
      %556 = vmatpush1.msra.mxu0 0.0
      %557 = vmatprep.subr.mxu0 0.0
      %558 = vmatpush1.msra.mxu0 0.0
      %559 = vmatprep.subr.mxu0 0.0
      %560 = vmatpush1.msra.mxu0 0.0
      %561 = vmatprep.subr.mxu0 0.0
      %562 = vmatpush1.msra.mxu0 0.0
      %563 = vmatprep.subr.mxu0 0.0
      %564 = vmatpush1.msra.mxu0 0.0
      %565 = vmatprep.subr.mxu0 0.0
      %566 = vmatpush1.msra.mxu0 0.0
      %567 = vmatprep.subr.mxu0 0.0
      %568 = vmatpush1.msra.mxu0 0.0
      %569 = vmatprep.subr.mxu0 0.0
      %570 = vmatpush1.msra.mxu0 0.0
      %571 = vmatprep.subr.mxu0 0.0
      %572 = vmatpush1.msra.mxu0 0.0
      %573 = vmatprep.subr.mxu0 0.0
      %574 = vmatpush1.msra.mxu0 0.0
      %575 = vmatprep.subr.mxu0 0.0
      %576 = vmatpush1.msra.mxu0 0.0
      %577 = vmatprep.subr.mxu0 0.0
      %578 = vmatpush1.msra.mxu0 0.0
      %579 = vmatprep.subr.mxu0 0.0
      %580 = vmatpush1.msra.mxu0 0.0
      %581 = vmatprep.subr.mxu0 0.0
      %582 = vmatpush1.msra.mxu0 0.0
      %583 = vmatprep.subr.mxu0 0.0
      %584 = vmatpush1.msra.mxu0 0.0
      %585 = vmatprep.subr.mxu0 0.0
      %586 = vmatpush1.msra.mxu0 0.0
      %587 = vmatprep.subr.mxu0 0.0
      %588 = vmatpush1.msra.mxu0 0.0
      %589 = vmatprep.mubr.f32.mxu0 0.0
      %590 = vmatmul.mubr.f32.gmra.mrb[0].mxu0 %v412
      %v591 = vpop.f32.mrb[0].mxu0
      %v592 = vadd.f32 %v523, %v591
      %v593 = vpop.f32.mrb[0].mxu0
      %594 = vdwg.mxu0
      %v595 = vmax.f32 %v592, 0.0
      %s596 = scalar_lea.vmem %s382, 8
      %v597 = vld [vmem:[%s596] sm:$0xff]
      %v598 = vld [vmem:[%s4] sm:$0x1]
      %v600 = vlaneseq
      %v601 = vshrl.u32 %v600, 7
      %v602 = vsub.s32 0, %v601
      %v603 = vrot.slane %v598, %v602
      %v605 = vmul.f32 %v597, %v603
      %v606 = vadd.f32 %v595, %v605
      %v607 = vld [vmem:[%s5] sm:$0x1]
      %v609 = vlaneseq
      %v610 = vshrl.u32 %v609, 7
      %v611 = vsub.s32 0, %v610
      %v612 = vrot.slane %v607, %v611
      %v614 = vadd.f32 %v606, %v612
      %v615 = vmax.f32 %v614, 0.0
      %616 = vst.msk [vmem:[#allocation3] sm:$0x1] %vm504, 0.0
      %617 = vst.msk [vmem:[#allocation3 + $0x1] sm:$0xff] %vm410, %v615
      %618 = vst.msk [vmem:[#allocation3 + $0x9] sm:$0x1] %vm504, 0.0
      %v619 = vld [vmem:[#allocation2] sm:$0xff]
      %v620 = vld [vmem:[#allocation2 + $0x8] sm:$0x3]
      %v621 = vld [vmem:[#allocation3] sm:$0xff]
      %v622 = vld [vmem:[#allocation3 + $0x8] sm:$0x3]
      %v623 = vld [vmem:[%s7] sm:$0x1]
      %v624 = vld [vmem:[%s6] sm:$0xff]
      %v625 = vld [vmem:[%s6 + $0x8] sm:$0xff]
      %v626 = vld [vmem:[%s6 + $0x10] sm:$0xff]
      %v627 = vld [vmem:[%s6 + $0x18] sm:$0xff]
      %v628 = vld [vmem:[%s6 + $0x20] sm:$0xff]
      %v629 = vld [vmem:[%s6 + $0x28] sm:$0xff]
      %v630 = vld [vmem:[%s6 + $0x30] sm:$0xff]
      %v631 = vld [vmem:[%s6 + $0x38] sm:$0xff]
      %s632 = scalar_lea.vmem %s6, 64
      %v633 = vld [vmem:[%s632] sm:$0xff]
      %v634 = vld [vmem:[%s632 + $0x8] sm:$0xff]
      %v635 = vld [vmem:[%s632 + $0x10] sm:$0xff]
      %v636 = vld [vmem:[%s632 + $0x18] sm:$0xff]
      %v637 = vld [vmem:[%s632 + $0x20] sm:$0xff]
      %v638 = vld [vmem:[%s632 + $0x28] sm:$0xff]
      %v639 = vld [vmem:[%s632 + $0x30] sm:$0xff]
      %v640 = vld [vmem:[%s632 + $0x38] sm:$0xff]
      %s641 = scalar_lea.vmem %s6, 128
      %v642 = vld [vmem:[%s641] sm:$0xff]
      %v643 = vld [vmem:[%s641 + $0x8] sm:$0xff]
      %v644 = vld [vmem:[%s641 + $0x10] sm:$0xff]
      %v645 = vld [vmem:[%s641 + $0x18] sm:$0xff]
      %v646 = vld [vmem:[%s641 + $0x20] sm:$0xff]
      %v647 = vld [vmem:[%s641 + $0x28] sm:$0xff]
      %v648 = vld [vmem:[%s641 + $0x30] sm:$0xff]
      %v649 = vld [vmem:[%s641 + $0x38] sm:$0xff]
      %s650 = scalar_lea.vmem %s6, 192
      %v651 = vld [vmem:[%s650] sm:$0xff]
      %v652 = vld [vmem:[%s650 + $0x8] sm:$0xff]
      %v653 = vld [vmem:[%s650 + $0x10] sm:$0xff]
      %v654 = vld [vmem:[%s650 + $0x18] sm:$0xff]
      %v655 = vld [vmem:[%s650 + $0x20] sm:$0xff]
      %v656 = vld [vmem:[%s650 + $0x28] sm:$0xff]
      %v657 = vld [vmem:[%s650 + $0x30] sm:$0xff]
      %v658 = vld [vmem:[%s650 + $0x38] sm:$0xff]
      %s659 = scalar_lea.vmem %s6, 256
      %v660 = vld [vmem:[%s659] sm:$0xff]
      %v661 = vld [vmem:[%s659 + $0x8] sm:$0xff]
      %v662 = vld [vmem:[%s659 + $0x10] sm:$0xff]
      %v663 = vld [vmem:[%s659 + $0x18] sm:$0xff]
      %v664 = vld [vmem:[%s659 + $0x20] sm:$0xff]
      %v665 = vld [vmem:[%s659 + $0x28] sm:$0xff]
      %v666 = vld [vmem:[%s659 + $0x30] sm:$0xff]
      %v667 = vld [vmem:[%s659 + $0x38] sm:$0xff]
      %v669 = vsel %vm410, %v621, 0
      %671 = vmatprep.subr.mxu0 0.0
      %672 = vmatpush1.msra.mxu0 %v633
      %673 = vmatprep.subr.mxu0 0.0
      %674 = vmatpush1.msra.mxu0 %v634
      %675 = vmatprep.subr.mxu0 0.0
      %676 = vmatpush1.msra.mxu0 %v635
      %677 = vmatprep.subr.mxu0 0.0
      %678 = vmatpush1.msra.mxu0 %v636
      %679 = vmatprep.subr.mxu0 0.0
      %680 = vmatpush1.msra.mxu0 %v637
      %681 = vmatprep.subr.mxu0 0.0
      %682 = vmatpush1.msra.mxu0 %v638
      %683 = vmatprep.subr.mxu0 0.0
      %684 = vmatpush1.msra.mxu0 %v639
      %685 = vmatprep.subr.mxu0 0.0
      %686 = vmatpush1.msra.mxu0 %v640
      %687 = vmatprep.subr.mxu0 0.0
      %688 = vmatpush1.msra.mxu0 0.0
      %689 = vmatprep.subr.mxu0 0.0
      %690 = vmatpush1.msra.mxu0 0.0
      %691 = vmatprep.subr.mxu0 0.0
      %692 = vmatpush1.msra.mxu0 0.0
      %693 = vmatprep.subr.mxu0 0.0
      %694 = vmatpush1.msra.mxu0 0.0
      %695 = vmatprep.subr.mxu0 0.0
      %696 = vmatpush1.msra.mxu0 0.0
      %697 = vmatprep.subr.mxu0 0.0
      %698 = vmatpush1.msra.mxu0 0.0
      %699 = vmatprep.subr.mxu0 0.0
      %700 = vmatpush1.msra.mxu0 0.0
      %701 = vmatprep.subr.mxu0 0.0
      %702 = vmatpush1.msra.mxu0 0.0
      %703 = vmatprep.subr.mxu0 0.0
      %704 = vmatpush1.msra.mxu0 0.0
      %705 = vmatprep.subr.mxu0 0.0
      %706 = vmatpush1.msra.mxu0 0.0
      %707 = vmatprep.subr.mxu0 0.0
      %708 = vmatpush1.msra.mxu0 0.0
      %709 = vmatprep.subr.mxu0 0.0
      %710 = vmatpush1.msra.mxu0 0.0
      %711 = vmatprep.subr.mxu0 0.0
      %712 = vmatpush1.msra.mxu0 0.0
      %713 = vmatprep.subr.mxu0 0.0
      %714 = vmatpush1.msra.mxu0 0.0
      %715 = vmatprep.subr.mxu0 0.0
      %716 = vmatpush1.msra.mxu0 0.0
      %717 = vmatprep.subr.mxu0 0.0
      %718 = vmatpush1.msra.mxu0 0.0
      %719 = vmatprep.subr.mxu0 0.0
      %720 = vmatpush1.msra.mxu0 0.0
      %721 = vmatprep.subr.mxu0 0.0
      %722 = vmatpush1.msra.mxu0 0.0
      %723 = vmatprep.subr.mxu0 0.0
      %724 = vmatpush1.msra.mxu0 0.0
      %725 = vmatprep.subr.mxu0 0.0
      %726 = vmatpush1.msra.mxu0 0.0
      %727 = vmatprep.subr.mxu0 0.0
      %728 = vmatpush1.msra.mxu0 0.0
      %729 = vmatprep.subr.mxu0 0.0
      %730 = vmatpush1.msra.mxu0 0.0
      %731 = vmatprep.subr.mxu0 0.0
      %732 = vmatpush1.msra.mxu0 0.0
      %733 = vmatprep.subr.mxu0 0.0
      %734 = vmatpush1.msra.mxu0 0.0
      %735 = vmatprep.mubr.f32.mxu0 0.0
      %736 = vmatmul.mubr.f32.gmra.mrb[0].mxu0 %v669
      %v737 = vpop.f32.mrb[0].mxu0
      %v738 = vadd.f32 0.0, %v737
      %v739 = vpop.f32.mrb[0].mxu0
      %740 = vdwg.mxu0
      %v742 = vsel %vm410, %v619, 0
      %744 = vmatprep.subr.mxu0 0.0
      %745 = vmatpush1.msra.mxu0 %v624
      %746 = vmatprep.subr.mxu0 0.0
      %747 = vmatpush1.msra.mxu0 %v625
      %748 = vmatprep.subr.mxu0 0.0
      %749 = vmatpush1.msra.mxu0 %v626
      %750 = vmatprep.subr.mxu0 0.0
      %751 = vmatpush1.msra.mxu0 %v627
      %752 = vmatprep.subr.mxu0 0.0
      %753 = vmatpush1.msra.mxu0 %v628
      %754 = vmatprep.subr.mxu0 0.0
      %755 = vmatpush1.msra.mxu0 %v629
      %756 = vmatprep.subr.mxu0 0.0
      %757 = vmatpush1.msra.mxu0 %v630
      %758 = vmatprep.subr.mxu0 0.0
      %759 = vmatpush1.msra.mxu0 %v631
      %760 = vmatprep.subr.mxu0 0.0
      %761 = vmatpush1.msra.mxu0 0.0
      %762 = vmatprep.subr.mxu0 0.0
      %763 = vmatpush1.msra.mxu0 0.0
      %764 = vmatprep.subr.mxu0 0.0
      %765 = vmatpush1.msra.mxu0 0.0
      %766 = vmatprep.subr.mxu0 0.0
      %767 = vmatpush1.msra.mxu0 0.0
      %768 = vmatprep.subr.mxu0 0.0
      %769 = vmatpush1.msra.mxu0 0.0
      %770 = vmatprep.subr.mxu0 0.0
      %771 = vmatpush1.msra.mxu0 0.0
      %772 = vmatprep.subr.mxu0 0.0
      %773 = vmatpush1.msra.mxu0 0.0
      %774 = vmatprep.subr.mxu0 0.0
      %775 = vmatpush1.msra.mxu0 0.0
      %776 = vmatprep.subr.mxu0 0.0
      %777 = vmatpush1.msra.mxu0 0.0
      %778 = vmatprep.subr.mxu0 0.0
      %779 = vmatpush1.msra.mxu0 0.0
      %780 = vmatprep.subr.mxu0 0.0
      %781 = vmatpush1.msra.mxu0 0.0
      %782 = vmatprep.subr.mxu0 0.0
      %783 = vmatpush1.msra.mxu0 0.0
      %784 = vmatprep.subr.mxu0 0.0
      %785 = vmatpush1.msra.mxu0 0.0
      %786 = vmatprep.subr.mxu0 0.0
      %787 = vmatpush1.msra.mxu0 0.0
      %788 = vmatprep.subr.mxu0 0.0
      %789 = vmatpush1.msra.mxu0 0.0
      %790 = vmatprep.subr.mxu0 0.0
      %791 = vmatpush1.msra.mxu0 0.0
      %792 = vmatprep.subr.mxu0 0.0
      %793 = vmatpush1.msra.mxu0 0.0
      %794 = vmatprep.subr.mxu0 0.0
      %795 = vmatpush1.msra.mxu0 0.0
      %796 = vmatprep.subr.mxu0 0.0
      %797 = vmatpush1.msra.mxu0 0.0
      %798 = vmatprep.subr.mxu0 0.0
      %799 = vmatpush1.msra.mxu0 0.0
      %800 = vmatprep.subr.mxu0 0.0
      %801 = vmatpush1.msra.mxu0 0.0
      %802 = vmatprep.subr.mxu0 0.0
      %803 = vmatpush1.msra.mxu0 0.0
      %804 = vmatprep.subr.mxu0 0.0
      %805 = vmatpush1.msra.mxu0 0.0
      %806 = vmatprep.subr.mxu0 0.0
      %807 = vmatpush1.msra.mxu0 0.0
      %808 = vmatprep.mubr.f32.mxu0 0.0
      %809 = vmatmul.mubr.f32.gmra.mrb[0].mxu0 %v742
      %v810 = vpop.f32.mrb[0].mxu0
      %v811 = vadd.f32 %v738, %v810
      %v812 = vpop.f32.mrb[0].mxu0
      %813 = vdwg.mxu0
      %vm815 = vcmask 1046528
      %v816 = vrot.slane %v619, 1
      %v817 = vrot.slane %v620, 1
      %v818 = vsel %vm815, %v816, %v817
      %v819 = vsel %vm410, %v818, 0
      %821 = vmatprep.subr.mxu0 0.0
      %822 = vmatpush1.msra.mxu0 %v642
      %823 = vmatprep.subr.mxu0 0.0
      %824 = vmatpush1.msra.mxu0 %v643
      %825 = vmatprep.subr.mxu0 0.0
      %826 = vmatpush1.msra.mxu0 %v644
      %827 = vmatprep.subr.mxu0 0.0
      %828 = vmatpush1.msra.mxu0 %v645
      %829 = vmatprep.subr.mxu0 0.0
      %830 = vmatpush1.msra.mxu0 %v646
      %831 = vmatprep.subr.mxu0 0.0
      %832 = vmatpush1.msra.mxu0 %v647
      %833 = vmatprep.subr.mxu0 0.0
      %834 = vmatpush1.msra.mxu0 %v648
      %835 = vmatprep.subr.mxu0 0.0
      %836 = vmatpush1.msra.mxu0 %v649
      %837 = vmatprep.subr.mxu0 0.0
      %838 = vmatpush1.msra.mxu0 0.0
      %839 = vmatprep.subr.mxu0 0.0
      %840 = vmatpush1.msra.mxu0 0.0
      %841 = vmatprep.subr.mxu0 0.0
      %842 = vmatpush1.msra.mxu0 0.0
      %843 = vmatprep.subr.mxu0 0.0
      %844 = vmatpush1.msra.mxu0 0.0
      %845 = vmatprep.subr.mxu0 0.0
      %846 = vmatpush1.msra.mxu0 0.0
      %847 = vmatprep.subr.mxu0 0.0
      %848 = vmatpush1.msra.mxu0 0.0
      %849 = vmatprep.subr.mxu0 0.0
      %850 = vmatpush1.msra.mxu0 0.0
      %851 = vmatprep.subr.mxu0 0.0
      %852 = vmatpush1.msra.mxu0 0.0
      %853 = vmatprep.subr.mxu0 0.0
      %854 = vmatpush1.msra.mxu0 0.0
      %855 = vmatprep.subr.mxu0 0.0
      %856 = vmatpush1.msra.mxu0 0.0
      %857 = vmatprep.subr.mxu0 0.0
      %858 = vmatpush1.msra.mxu0 0.0
      %859 = vmatprep.subr.mxu0 0.0
      %860 = vmatpush1.msra.mxu0 0.0
      %861 = vmatprep.subr.mxu0 0.0
      %862 = vmatpush1.msra.mxu0 0.0
      %863 = vmatprep.subr.mxu0 0.0
      %864 = vmatpush1.msra.mxu0 0.0
      %865 = vmatprep.subr.mxu0 0.0
      %866 = vmatpush1.msra.mxu0 0.0
      %867 = vmatprep.subr.mxu0 0.0
      %868 = vmatpush1.msra.mxu0 0.0
      %869 = vmatprep.subr.mxu0 0.0
      %870 = vmatpush1.msra.mxu0 0.0
      %871 = vmatprep.subr.mxu0 0.0
      %872 = vmatpush1.msra.mxu0 0.0
      %873 = vmatprep.subr.mxu0 0.0
      %874 = vmatpush1.msra.mxu0 0.0
      %875 = vmatprep.subr.mxu0 0.0
      %876 = vmatpush1.msra.mxu0 0.0
      %877 = vmatprep.subr.mxu0 0.0
      %878 = vmatpush1.msra.mxu0 0.0
      %879 = vmatprep.subr.mxu0 0.0
      %880 = vmatpush1.msra.mxu0 0.0
      %881 = vmatprep.subr.mxu0 0.0
      %882 = vmatpush1.msra.mxu0 0.0
      %883 = vmatprep.subr.mxu0 0.0
      %884 = vmatpush1.msra.mxu0 0.0
      %885 = vmatprep.mubr.f32.mxu0 0.0
      %886 = vmatmul.mubr.f32.gmra.mrb[0].mxu0 %v819
      %v887 = vpop.f32.mrb[0].mxu0
      %v888 = vadd.f32 0.0, %v887
      %v889 = vpop.f32.mrb[0].mxu0
      %890 = vdwg.mxu0
      %v891 = vadd.f32 %v811, %v888
      %v893 = vrot.slane %v621, 1
      %v894 = vrot.slane %v622, 1
      %v895 = vsel %vm815, %v893, %v894
      %v896 = vsel %vm410, %v895, 0
      %898 = vmatprep.subr.mxu0 0.0
      %899 = vmatpush1.msra.mxu0 %v651
      %900 = vmatprep.subr.mxu0 0.0
      %901 = vmatpush1.msra.mxu0 %v652
      %902 = vmatprep.subr.mxu0 0.0
      %903 = vmatpush1.msra.mxu0 %v653
      %904 = vmatprep.subr.mxu0 0.0
      %905 = vmatpush1.msra.mxu0 %v654
      %906 = vmatprep.subr.mxu0 0.0
      %907 = vmatpush1.msra.mxu0 %v655
      %908 = vmatprep.subr.mxu0 0.0
      %909 = vmatpush1.msra.mxu0 %v656
      %910 = vmatprep.subr.mxu0 0.0
      %911 = vmatpush1.msra.mxu0 %v657
      %912 = vmatprep.subr.mxu0 0.0
      %913 = vmatpush1.msra.mxu0 %v658
      %914 = vmatprep.subr.mxu0 0.0
      %915 = vmatpush1.msra.mxu0 0.0
      %916 = vmatprep.subr.mxu0 0.0
      %917 = vmatpush1.msra.mxu0 0.0
      %918 = vmatprep.subr.mxu0 0.0
      %919 = vmatpush1.msra.mxu0 0.0
      %920 = vmatprep.subr.mxu0 0.0
      %921 = vmatpush1.msra.mxu0 0.0
      %922 = vmatprep.subr.mxu0 0.0
      %923 = vmatpush1.msra.mxu0 0.0
      %924 = vmatprep.subr.mxu0 0.0
      %925 = vmatpush1.msra.mxu0 0.0
      %926 = vmatprep.subr.mxu0 0.0
      %927 = vmatpush1.msra.mxu0 0.0
      %928 = vmatprep.subr.mxu0 0.0
      %929 = vmatpush1.msra.mxu0 0.0
      %930 = vmatprep.subr.mxu0 0.0
      %931 = vmatpush1.msra.mxu0 0.0
      %932 = vmatprep.subr.mxu0 0.0
      %933 = vmatpush1.msra.mxu0 0.0
      %934 = vmatprep.subr.mxu0 0.0
      %935 = vmatpush1.msra.mxu0 0.0
      %936 = vmatprep.subr.mxu0 0.0
      %937 = vmatpush1.msra.mxu0 0.0
      %938 = vmatprep.subr.mxu0 0.0
      %939 = vmatpush1.msra.mxu0 0.0
      %940 = vmatprep.subr.mxu0 0.0
      %941 = vmatpush1.msra.mxu0 0.0
      %942 = vmatprep.subr.mxu0 0.0
      %943 = vmatpush1.msra.mxu0 0.0
      %944 = vmatprep.subr.mxu0 0.0
      %945 = vmatpush1.msra.mxu0 0.0
      %946 = vmatprep.subr.mxu0 0.0
      %947 = vmatpush1.msra.mxu0 0.0
      %948 = vmatprep.subr.mxu0 0.0
      %949 = vmatpush1.msra.mxu0 0.0
      %950 = vmatprep.subr.mxu0 0.0
      %951 = vmatpush1.msra.mxu0 0.0
      %952 = vmatprep.subr.mxu0 0.0
      %953 = vmatpush1.msra.mxu0 0.0
      %954 = vmatprep.subr.mxu0 0.0
      %955 = vmatpush1.msra.mxu0 0.0
      %956 = vmatprep.subr.mxu0 0.0
      %957 = vmatpush1.msra.mxu0 0.0
      %958 = vmatprep.subr.mxu0 0.0
      %959 = vmatpush1.msra.mxu0 0.0
      %960 = vmatprep.subr.mxu0 0.0
      %961 = vmatpush1.msra.mxu0 0.0
      %962 = vmatprep.mubr.f32.mxu0 0.0
      %963 = vmatmul.mubr.f32.gmra.mrb[0].mxu0 %v896
      %v964 = vpop.f32.mrb[0].mxu0
      %v965 = vadd.f32 0.0, %v964
      %v966 = vpop.f32.mrb[0].mxu0
      %967 = vdwg.mxu0
      %v968 = vadd.f32 %v891, %v965
      %vm969 = vcmask 1045504
      %v970 = vrot.slane %v619, 2
      %v971 = vrot.slane %v620, 2
      %v972 = vsel %vm969, %v970, %v971
      %v973 = vsel %vm410, %v972, 0
      %975 = vmatprep.subr.mxu0 0.0
      %976 = vmatpush1.msra.mxu0 %v660
      %977 = vmatprep.subr.mxu0 0.0
      %978 = vmatpush1.msra.mxu0 %v661
      %979 = vmatprep.subr.mxu0 0.0
      %980 = vmatpush1.msra.mxu0 %v662
      %981 = vmatprep.subr.mxu0 0.0
      %982 = vmatpush1.msra.mxu0 %v663
      %983 = vmatprep.subr.mxu0 0.0
      %984 = vmatpush1.msra.mxu0 %v664
      %985 = vmatprep.subr.mxu0 0.0
      %986 = vmatpush1.msra.mxu0 %v665
      %987 = vmatprep.subr.mxu0 0.0
      %988 = vmatpush1.msra.mxu0 %v666
      %989 = vmatprep.subr.mxu0 0.0
      %990 = vmatpush1.msra.mxu0 %v667
      %991 = vmatprep.subr.mxu0 0.0
      %992 = vmatpush1.msra.mxu0 0.0
      %993 = vmatprep.subr.mxu0 0.0
      %994 = vmatpush1.msra.mxu0 0.0
      %995 = vmatprep.subr.mxu0 0.0
      %996 = vmatpush1.msra.mxu0 0.0
      %997 = vmatprep.subr.mxu0 0.0
      %998 = vmatpush1.msra.mxu0 0.0
      %999 = vmatprep.subr.mxu0 0.0
      %1000 = vmatpush1.msra.mxu0 0.0
      %1001 = vmatprep.subr.mxu0 0.0
      %1002 = vmatpush1.msra.mxu0 0.0
      %1003 = vmatprep.subr.mxu0 0.0
      %1004 = vmatpush1.msra.mxu0 0.0
      %1005 = vmatprep.subr.mxu0 0.0
      %1006 = vmatpush1.msra.mxu0 0.0
      %1007 = vmatprep.subr.mxu0 0.0
      %1008 = vmatpush1.msra.mxu0 0.0
      %1009 = vmatprep.subr.mxu0 0.0
      %1010 = vmatpush1.msra.mxu0 0.0
      %1011 = vmatprep.subr.mxu0 0.0
      %1012 = vmatpush1.msra.mxu0 0.0
      %1013 = vmatprep.subr.mxu0 0.0
      %1014 = vmatpush1.msra.mxu0 0.0
      %1015 = vmatprep.subr.mxu0 0.0
      %1016 = vmatpush1.msra.mxu0 0.0
      %1017 = vmatprep.subr.mxu0 0.0
      %1018 = vmatpush1.msra.mxu0 0.0
      %1019 = vmatprep.subr.mxu0 0.0
      %1020 = vmatpush1.msra.mxu0 0.0
      %1021 = vmatprep.subr.mxu0 0.0
      %1022 = vmatpush1.msra.mxu0 0.0
      %1023 = vmatprep.subr.mxu0 0.0
      %1024 = vmatpush1.msra.mxu0 0.0
      %1025 = vmatprep.subr.mxu0 0.0
      %1026 = vmatpush1.msra.mxu0 0.0
      %1027 = vmatprep.subr.mxu0 0.0
      %1028 = vmatpush1.msra.mxu0 0.0
      %1029 = vmatprep.subr.mxu0 0.0
      %1030 = vmatpush1.msra.mxu0 0.0
      %1031 = vmatprep.subr.mxu0 0.0
      %1032 = vmatpush1.msra.mxu0 0.0
      %1033 = vmatprep.subr.mxu0 0.0
      %1034 = vmatpush1.msra.mxu0 0.0
      %1035 = vmatprep.subr.mxu0 0.0
      %1036 = vmatpush1.msra.mxu0 0.0
      %1037 = vmatprep.subr.mxu0 0.0
      %1038 = vmatpush1.msra.mxu0 0.0
      %1039 = vmatprep.mubr.f32.mxu0 0.0
      %1040 = vmatmul.mubr.f32.gmra.mrb[0].mxu0 %v973
      %v1041 = vpop.f32.mrb[0].mxu0
      %v1042 = vadd.f32 0.0, %v1041
      %v1043 = vpop.f32.mrb[0].mxu0
      %1044 = vdwg.mxu0
      %v1045 = vadd.f32 %v968, %v1042
      %v1047 = vlaneseq
      %v1048 = vshrl.u32 %v1047, 7
      %v1049 = vsub.s32 0, %v1048
      %v1050 = vrot.slane %v623, %v1049
      %v1052 = vadd.f32 %v1045, %v1050
      %1053 = vmatprep.subr.mxu0 0.0
      %1054 = vmatpush1.msra.mxu0 %v633
      %1055 = vmatprep.subr.mxu0 0.0
      %1056 = vmatpush1.msra.mxu0 %v634
      %1057 = vmatprep.subr.mxu0 0.0
      %1058 = vmatpush1.msra.mxu0 %v635
      %1059 = vmatprep.subr.mxu0 0.0
      %1060 = vmatpush1.msra.mxu0 %v636
      %1061 = vmatprep.subr.mxu0 0.0
      %1062 = vmatpush1.msra.mxu0 %v637
      %1063 = vmatprep.subr.mxu0 0.0
      %1064 = vmatpush1.msra.mxu0 %v638
      %1065 = vmatprep.subr.mxu0 0.0
      %1066 = vmatpush1.msra.mxu0 %v639
      %1067 = vmatprep.subr.mxu0 0.0
      %1068 = vmatpush1.msra.mxu0 %v640
      %1069 = vmatprep.subr.mxu0 0.0
      %1070 = vmatpush1.msra.mxu0 0.0
      %1071 = vmatprep.subr.mxu0 0.0
      %1072 = vmatpush1.msra.mxu0 0.0
      %1073 = vmatprep.subr.mxu0 0.0
      %1074 = vmatpush1.msra.mxu0 0.0
      %1075 = vmatprep.subr.mxu0 0.0
      %1076 = vmatpush1.msra.mxu0 0.0
      %1077 = vmatprep.subr.mxu0 0.0
      %1078 = vmatpush1.msra.mxu0 0.0
      %1079 = vmatprep.subr.mxu0 0.0
      %1080 = vmatpush1.msra.mxu0 0.0
      %1081 = vmatprep.subr.mxu0 0.0
      %1082 = vmatpush1.msra.mxu0 0.0
      %1083 = vmatprep.subr.mxu0 0.0
      %1084 = vmatpush1.msra.mxu0 0.0
      %1085 = vmatprep.subr.mxu0 0.0
      %1086 = vmatpush1.msra.mxu0 0.0
      %1087 = vmatprep.subr.mxu0 0.0
      %1088 = vmatpush1.msra.mxu0 0.0
      %1089 = vmatprep.subr.mxu0 0.0
      %1090 = vmatpush1.msra.mxu0 0.0
      %1091 = vmatprep.subr.mxu0 0.0
      %1092 = vmatpush1.msra.mxu0 0.0
      %1093 = vmatprep.subr.mxu0 0.0
      %1094 = vmatpush1.msra.mxu0 0.0
      %1095 = vmatprep.subr.mxu0 0.0
      %1096 = vmatpush1.msra.mxu0 0.0
      %1097 = vmatprep.subr.mxu0 0.0
      %1098 = vmatpush1.msra.mxu0 0.0
      %1099 = vmatprep.subr.mxu0 0.0
      %1100 = vmatpush1.msra.mxu0 0.0
      %1101 = vmatprep.subr.mxu0 0.0
      %1102 = vmatpush1.msra.mxu0 0.0
      %1103 = vmatprep.subr.mxu0 0.0
      %1104 = vmatpush1.msra.mxu0 0.0
      %1105 = vmatprep.subr.mxu0 0.0
      %1106 = vmatpush1.msra.mxu0 0.0
      %1107 = vmatprep.subr.mxu0 0.0
      %1108 = vmatpush1.msra.mxu0 0.0
      %1109 = vmatprep.subr.mxu0 0.0
      %1110 = vmatpush1.msra.mxu0 0.0
      %1111 = vmatprep.subr.mxu0 0.0
      %1112 = vmatpush1.msra.mxu0 0.0
      %1113 = vmatprep.subr.mxu0 0.0
      %1114 = vmatpush1.msra.mxu0 0.0
      %1115 = vmatprep.subr.mxu0 0.0
      %1116 = vmatpush1.msra.mxu0 0.0
      %1117 = vmatprep.mubr.f32.mxu0 0.0
      %1118 = vmatmul.mubr.f32.gmra.mrb[0].mxu0 %v819
      %v1119 = vpop.f32.mrb[0].mxu0
      %v1120 = vadd.f32 0.0, %v1119
      %v1121 = vpop.f32.mrb[0].mxu0
      %1122 = vdwg.mxu0
      %1123 = vmatprep.subr.mxu0 0.0
      %1124 = vmatpush1.msra.mxu0 %v624
      %1125 = vmatprep.subr.mxu0 0.0
      %1126 = vmatpush1.msra.mxu0 %v625
      %1127 = vmatprep.subr.mxu0 0.0
      %1128 = vmatpush1.msra.mxu0 %v626
      %1129 = vmatprep.subr.mxu0 0.0
      %1130 = vmatpush1.msra.mxu0 %v627
      %1131 = vmatprep.subr.mxu0 0.0
      %1132 = vmatpush1.msra.mxu0 %v628
      %1133 = vmatprep.subr.mxu0 0.0
      %1134 = vmatpush1.msra.mxu0 %v629
      %1135 = vmatprep.subr.mxu0 0.0
      %1136 = vmatpush1.msra.mxu0 %v630
      %1137 = vmatprep.subr.mxu0 0.0
      %1138 = vmatpush1.msra.mxu0 %v631
      %1139 = vmatprep.subr.mxu0 0.0
      %1140 = vmatpush1.msra.mxu0 0.0
      %1141 = vmatprep.subr.mxu0 0.0
      %1142 = vmatpush1.msra.mxu0 0.0
      %1143 = vmatprep.subr.mxu0 0.0
      %1144 = vmatpush1.msra.mxu0 0.0
      %1145 = vmatprep.subr.mxu0 0.0
      %1146 = vmatpush1.msra.mxu0 0.0
      %1147 = vmatprep.subr.mxu0 0.0
      %1148 = vmatpush1.msra.mxu0 0.0
      %1149 = vmatprep.subr.mxu0 0.0
      %1150 = vmatpush1.msra.mxu0 0.0
      %1151 = vmatprep.subr.mxu0 0.0
      %1152 = vmatpush1.msra.mxu0 0.0
      %1153 = vmatprep.subr.mxu0 0.0
      %1154 = vmatpush1.msra.mxu0 0.0
      %1155 = vmatprep.subr.mxu0 0.0
      %1156 = vmatpush1.msra.mxu0 0.0
      %1157 = vmatprep.subr.mxu0 0.0
      %1158 = vmatpush1.msra.mxu0 0.0
      %1159 = vmatprep.subr.mxu0 0.0
      %1160 = vmatpush1.msra.mxu0 0.0
      %1161 = vmatprep.subr.mxu0 0.0
      %1162 = vmatpush1.msra.mxu0 0.0
      %1163 = vmatprep.subr.mxu0 0.0
      %1164 = vmatpush1.msra.mxu0 0.0
      %1165 = vmatprep.subr.mxu0 0.0
      %1166 = vmatpush1.msra.mxu0 0.0
      %1167 = vmatprep.subr.mxu0 0.0
      %1168 = vmatpush1.msra.mxu0 0.0
      %1169 = vmatprep.subr.mxu0 0.0
      %1170 = vmatpush1.msra.mxu0 0.0
      %1171 = vmatprep.subr.mxu0 0.0
      %1172 = vmatpush1.msra.mxu0 0.0
      %1173 = vmatprep.subr.mxu0 0.0
      %1174 = vmatpush1.msra.mxu0 0.0
      %1175 = vmatprep.subr.mxu0 0.0
      %1176 = vmatpush1.msra.mxu0 0.0
      %1177 = vmatprep.subr.mxu0 0.0
      %1178 = vmatpush1.msra.mxu0 0.0
      %1179 = vmatprep.subr.mxu0 0.0
      %1180 = vmatpush1.msra.mxu0 0.0
      %1181 = vmatprep.subr.mxu0 0.0
      %1182 = vmatpush1.msra.mxu0 0.0
      %1183 = vmatprep.subr.mxu0 0.0
      %1184 = vmatpush1.msra.mxu0 0.0
      %1185 = vmatprep.subr.mxu0 0.0
      %1186 = vmatpush1.msra.mxu0 0.0
      %1187 = vmatprep.mubr.f32.mxu0 0.0
      %1188 = vmatmul.mubr.f32.gmra.mrb[0].mxu0 %v669
      %v1189 = vpop.f32.mrb[0].mxu0
      %v1190 = vadd.f32 %v1120, %v1189
      %v1191 = vpop.f32.mrb[0].mxu0
      %1192 = vdwg.mxu0
      %1193 = vmatprep.subr.mxu0 0.0
      %1194 = vmatpush1.msra.mxu0 %v642
      %1195 = vmatprep.subr.mxu0 0.0
      %1196 = vmatpush1.msra.mxu0 %v643
      %1197 = vmatprep.subr.mxu0 0.0
      %1198 = vmatpush1.msra.mxu0 %v644
      %1199 = vmatprep.subr.mxu0 0.0
      %1200 = vmatpush1.msra.mxu0 %v645
      %1201 = vmatprep.subr.mxu0 0.0
      %1202 = vmatpush1.msra.mxu0 %v646
      %1203 = vmatprep.subr.mxu0 0.0
      %1204 = vmatpush1.msra.mxu0 %v647
      %1205 = vmatprep.subr.mxu0 0.0
      %1206 = vmatpush1.msra.mxu0 %v648
      %1207 = vmatprep.subr.mxu0 0.0
      %1208 = vmatpush1.msra.mxu0 %v649
      %1209 = vmatprep.subr.mxu0 0.0
      %1210 = vmatpush1.msra.mxu0 0.0
      %1211 = vmatprep.subr.mxu0 0.0
      %1212 = vmatpush1.msra.mxu0 0.0
      %1213 = vmatprep.subr.mxu0 0.0
      %1214 = vmatpush1.msra.mxu0 0.0
      %1215 = vmatprep.subr.mxu0 0.0
      %1216 = vmatpush1.msra.mxu0 0.0
      %1217 = vmatprep.subr.mxu0 0.0
      %1218 = vmatpush1.msra.mxu0 0.0
      %1219 = vmatprep.subr.mxu0 0.0
      %1220 = vmatpush1.msra.mxu0 0.0
      %1221 = vmatprep.subr.mxu0 0.0
      %1222 = vmatpush1.msra.mxu0 0.0
      %1223 = vmatprep.subr.mxu0 0.0
      %1224 = vmatpush1.msra.mxu0 0.0
      %1225 = vmatprep.subr.mxu0 0.0
      %1226 = vmatpush1.msra.mxu0 0.0
      %1227 = vmatprep.subr.mxu0 0.0
      %1228 = vmatpush1.msra.mxu0 0.0
      %1229 = vmatprep.subr.mxu0 0.0
      %1230 = vmatpush1.msra.mxu0 0.0
      %1231 = vmatprep.subr.mxu0 0.0
      %1232 = vmatpush1.msra.mxu0 0.0
      %1233 = vmatprep.subr.mxu0 0.0
      %1234 = vmatpush1.msra.mxu0 0.0
      %1235 = vmatprep.subr.mxu0 0.0
      %1236 = vmatpush1.msra.mxu0 0.0
      %1237 = vmatprep.subr.mxu0 0.0
      %1238 = vmatpush1.msra.mxu0 0.0
      %1239 = vmatprep.subr.mxu0 0.0
      %1240 = vmatpush1.msra.mxu0 0.0
      %1241 = vmatprep.subr.mxu0 0.0
      %1242 = vmatpush1.msra.mxu0 0.0
      %1243 = vmatprep.subr.mxu0 0.0
      %1244 = vmatpush1.msra.mxu0 0.0
      %1245 = vmatprep.subr.mxu0 0.0
      %1246 = vmatpush1.msra.mxu0 0.0
      %1247 = vmatprep.subr.mxu0 0.0
      %1248 = vmatpush1.msra.mxu0 0.0
      %1249 = vmatprep.subr.mxu0 0.0
      %1250 = vmatpush1.msra.mxu0 0.0
      %1251 = vmatprep.subr.mxu0 0.0
      %1252 = vmatpush1.msra.mxu0 0.0
      %1253 = vmatprep.subr.mxu0 0.0
      %1254 = vmatpush1.msra.mxu0 0.0
      %1255 = vmatprep.subr.mxu0 0.0
      %1256 = vmatpush1.msra.mxu0 0.0
      %1257 = vmatprep.mubr.f32.mxu0 0.0
      %1258 = vmatmul.mubr.f32.gmra.mrb[0].mxu0 %v896
      %v1259 = vpop.f32.mrb[0].mxu0
      %v1260 = vadd.f32 0.0, %v1259
      %v1261 = vpop.f32.mrb[0].mxu0
      %1262 = vdwg.mxu0
      %v1263 = vadd.f32 %v1190, %v1260
      %1264 = vmatprep.subr.mxu0 0.0
      %1265 = vmatpush1.msra.mxu0 %v651
      %1266 = vmatprep.subr.mxu0 0.0
      %1267 = vmatpush1.msra.mxu0 %v652
      %1268 = vmatprep.subr.mxu0 0.0
      %1269 = vmatpush1.msra.mxu0 %v653
      %1270 = vmatprep.subr.mxu0 0.0
      %1271 = vmatpush1.msra.mxu0 %v654
      %1272 = vmatprep.subr.mxu0 0.0
      %1273 = vmatpush1.msra.mxu0 %v655
      %1274 = vmatprep.subr.mxu0 0.0
      %1275 = vmatpush1.msra.mxu0 %v656
      %1276 = vmatprep.subr.mxu0 0.0
      %1277 = vmatpush1.msra.mxu0 %v657
      %1278 = vmatprep.subr.mxu0 0.0
      %1279 = vmatpush1.msra.mxu0 %v658
      %1280 = vmatprep.subr.mxu0 0.0
      %1281 = vmatpush1.msra.mxu0 0.0
      %1282 = vmatprep.subr.mxu0 0.0
      %1283 = vmatpush1.msra.mxu0 0.0
      %1284 = vmatprep.subr.mxu0 0.0
      %1285 = vmatpush1.msra.mxu0 0.0
      %1286 = vmatprep.subr.mxu0 0.0
      %1287 = vmatpush1.msra.mxu0 0.0
      %1288 = vmatprep.subr.mxu0 0.0
      %1289 = vmatpush1.msra.mxu0 0.0
      %1290 = vmatprep.subr.mxu0 0.0
      %1291 = vmatpush1.msra.mxu0 0.0
      %1292 = vmatprep.subr.mxu0 0.0
      %1293 = vmatpush1.msra.mxu0 0.0
      %1294 = vmatprep.subr.mxu0 0.0
      %1295 = vmatpush1.msra.mxu0 0.0
      %1296 = vmatprep.subr.mxu0 0.0
      %1297 = vmatpush1.msra.mxu0 0.0
      %1298 = vmatprep.subr.mxu0 0.0
      %1299 = vmatpush1.msra.mxu0 0.0
      %1300 = vmatprep.subr.mxu0 0.0
      %1301 = vmatpush1.msra.mxu0 0.0
      %1302 = vmatprep.subr.mxu0 0.0
      %1303 = vmatpush1.msra.mxu0 0.0
      %1304 = vmatprep.subr.mxu0 0.0
      %1305 = vmatpush1.msra.mxu0 0.0
      %1306 = vmatprep.subr.mxu0 0.0
      %1307 = vmatpush1.msra.mxu0 0.0
      %1308 = vmatprep.subr.mxu0 0.0
      %1309 = vmatpush1.msra.mxu0 0.0
      %1310 = vmatprep.subr.mxu0 0.0
      %1311 = vmatpush1.msra.mxu0 0.0
      %1312 = vmatprep.subr.mxu0 0.0
      %1313 = vmatpush1.msra.mxu0 0.0
      %1314 = vmatprep.subr.mxu0 0.0
      %1315 = vmatpush1.msra.mxu0 0.0
      %1316 = vmatprep.subr.mxu0 0.0
      %1317 = vmatpush1.msra.mxu0 0.0
      %1318 = vmatprep.subr.mxu0 0.0
      %1319 = vmatpush1.msra.mxu0 0.0
      %1320 = vmatprep.subr.mxu0 0.0
      %1321 = vmatpush1.msra.mxu0 0.0
      %1322 = vmatprep.subr.mxu0 0.0
      %1323 = vmatpush1.msra.mxu0 0.0
      %1324 = vmatprep.subr.mxu0 0.0
      %1325 = vmatpush1.msra.mxu0 0.0
      %1326 = vmatprep.subr.mxu0 0.0
      %1327 = vmatpush1.msra.mxu0 0.0
      %1328 = vmatprep.mubr.f32.mxu0 0.0
      %1329 = vmatmul.mubr.f32.gmra.mrb[0].mxu0 %v973
      %v1330 = vpop.f32.mrb[0].mxu0
      %v1331 = vadd.f32 0.0, %v1330
      %v1332 = vpop.f32.mrb[0].mxu0
      %1333 = vdwg.mxu0
      %v1334 = vadd.f32 %v1263, %v1331
      %v1335 = vrot.slane %v621, 2
      %v1336 = vrot.slane %v622, 2
      %v1337 = vsel %vm969, %v1335, %v1336
      %v1338 = vsel %vm410, %v1337, 0
      %1340 = vmatprep.subr.mxu0 0.0
      %1341 = vmatpush1.msra.mxu0 %v660
      %1342 = vmatprep.subr.mxu0 0.0
      %1343 = vmatpush1.msra.mxu0 %v661
      %1344 = vmatprep.subr.mxu0 0.0
      %1345 = vmatpush1.msra.mxu0 %v662
      %1346 = vmatprep.subr.mxu0 0.0
      %1347 = vmatpush1.msra.mxu0 %v663
      %1348 = vmatprep.subr.mxu0 0.0
      %1349 = vmatpush1.msra.mxu0 %v664
      %1350 = vmatprep.subr.mxu0 0.0
      %1351 = vmatpush1.msra.mxu0 %v665
      %1352 = vmatprep.subr.mxu0 0.0
      %1353 = vmatpush1.msra.mxu0 %v666
      %1354 = vmatprep.subr.mxu0 0.0
      %1355 = vmatpush1.msra.mxu0 %v667
      %1356 = vmatprep.subr.mxu0 0.0
      %1357 = vmatpush1.msra.mxu0 0.0
      %1358 = vmatprep.subr.mxu0 0.0
      %1359 = vmatpush1.msra.mxu0 0.0
      %1360 = vmatprep.subr.mxu0 0.0
      %1361 = vmatpush1.msra.mxu0 0.0
      %1362 = vmatprep.subr.mxu0 0.0
      %1363 = vmatpush1.msra.mxu0 0.0
      %1364 = vmatprep.subr.mxu0 0.0
      %1365 = vmatpush1.msra.mxu0 0.0
      %1366 = vmatprep.subr.mxu0 0.0
      %1367 = vmatpush1.msra.mxu0 0.0
      %1368 = vmatprep.subr.mxu0 0.0
      %1369 = vmatpush1.msra.mxu0 0.0
      %1370 = vmatprep.subr.mxu0 0.0
      %1371 = vmatpush1.msra.mxu0 0.0
      %1372 = vmatprep.subr.mxu0 0.0
      %1373 = vmatpush1.msra.mxu0 0.0
      %1374 = vmatprep.subr.mxu0 0.0
      %1375 = vmatpush1.msra.mxu0 0.0
      %1376 = vmatprep.subr.mxu0 0.0
      %1377 = vmatpush1.msra.mxu0 0.0
      %1378 = vmatprep.subr.mxu0 0.0
      %1379 = vmatpush1.msra.mxu0 0.0
      %1380 = vmatprep.subr.mxu0 0.0
      %1381 = vmatpush1.msra.mxu0 0.0
      %1382 = vmatprep.subr.mxu0 0.0
      %1383 = vmatpush1.msra.mxu0 0.0
      %1384 = vmatprep.subr.mxu0 0.0
      %1385 = vmatpush1.msra.mxu0 0.0
      %1386 = vmatprep.subr.mxu0 0.0
      %1387 = vmatpush1.msra.mxu0 0.0
      %1388 = vmatprep.subr.mxu0 0.0
      %1389 = vmatpush1.msra.mxu0 0.0
      %1390 = vmatprep.subr.mxu0 0.0
      %1391 = vmatpush1.msra.mxu0 0.0
      %1392 = vmatprep.subr.mxu0 0.0
      %1393 = vmatpush1.msra.mxu0 0.0
      %1394 = vmatprep.subr.mxu0 0.0
      %1395 = vmatpush1.msra.mxu0 0.0
      %1396 = vmatprep.subr.mxu0 0.0
      %1397 = vmatpush1.msra.mxu0 0.0
      %1398 = vmatprep.subr.mxu0 0.0
      %1399 = vmatpush1.msra.mxu0 0.0
      %1400 = vmatprep.subr.mxu0 0.0
      %1401 = vmatpush1.msra.mxu0 0.0
      %1402 = vmatprep.subr.mxu0 0.0
      %1403 = vmatpush1.msra.mxu0 0.0
      %1404 = vmatprep.mubr.f32.mxu0 0.0
      %1405 = vmatmul.mubr.f32.gmra.mrb[0].mxu0 %v1338
      %v1406 = vpop.f32.mrb[0].mxu0
      %v1407 = vadd.f32 0.0, %v1406
      %v1408 = vpop.f32.mrb[0].mxu0
      %1409 = vdwg.mxu0
      %v1410 = vadd.f32 %v1334, %v1407
      %v1411 = vadd.f32 %v1410, %v1050
      %1412 = vst.msk [vmem:[%s387] sm:$0xff] %vm410, %v1052
      %s1413 = scalar_lea.vmem %s387, 8
      %1414 = vst.msk [vmem:[%s1413] sm:$0xff] %vm410, %v1411
      %v1415 = vsel %vm410, %v1052, 0.0
      %v1416 = vrot.slane %v1415, 4
      %v1417 = vadd.f32 %v1415, %v1416
      %v1418 = vrot.slane %v1417, 2
      %v1419 = vadd.f32 %v1417, %v1418
      %v1420 = vrot.slane %v1419, 1
      %v1421 = vadd.f32 %v1419, %v1420
      %v1422 = vsel %vm410, %v1411, 0.0
      %v1423 = vrot.slane %v1422, 4
      %v1424 = vadd.f32 %v1422, %v1423
      %v1425 = vrot.slane %v1424, 2
      %v1426 = vadd.f32 %v1424, %v1425
      %v1427 = vrot.slane %v1426, 1
      %v1428 = vadd.f32 %v1426, %v1427
      %v1429 = vadd.f32 %v1421, %v1428
      %1430 = vst.msk [vmem:[%s390] sm:$0x1] %vm504, %v1429
      %v1431 = vmul.f32 %v1052, %v1052
      %v1432 = vsel %vm410, %v1431, 0.0
      %v1433 = vrot.slane %v1432, 4
      %v1434 = vadd.f32 %v1432, %v1433
      %v1435 = vrot.slane %v1434, 2
      %v1436 = vadd.f32 %v1434, %v1435
      %v1437 = vrot.slane %v1436, 1
      %v1438 = vadd.f32 %v1436, %v1437
      %v1439 = vmul.f32 %v1411, %v1411
      %v1440 = vsel %vm410, %v1439, 0.0
      %v1441 = vrot.slane %v1440, 4
      %v1442 = vadd.f32 %v1440, %v1441
      %v1443 = vrot.slane %v1442, 2
      %v1444 = vadd.f32 %v1442, %v1443
      %v1445 = vrot.slane %v1444, 1
      %v1446 = vadd.f32 %v1444, %v1445
      %v1447 = vadd.f32 %v1438, %v1446
      %1448 = vst.msk [vmem:[%s393] sm:$0x1] %vm504, %v1447
      %p1449 = scmp.lt.s32.totalorder %s22, 1
      %s1450 = scalar_select %p1449, %s22, 1
      %s1451 = smul.addr %s1450, 2
      %s1452 = smul.addr %s1451, 8
      %s1453 = scalar_lea.vmem %s8, %s1452
      %p1454 = scmp.lt.s32.totalorder %s22, 1
      %s1455 = scalar_select %p1454, %s22, 1
      %s1456 = scalar_lea.vmem %s9, %s1455
      %p1457 = scmp.lt.s32.totalorder %s22, 1
      %s1458 = scalar_select %p1457, %s22, 1
      %s1459 = scalar_lea.vmem %s10, %s1458
      // Predicated region
      $region53: #{_upblock_forward.4} parent=51 // pred_check
        %p1460 = pneg %p218
      $region54: #{_upblock_forward.4} parent=51 // pred_check_branch
        %1462 = sbr.rel (%p1460) target = $region56
      $region55: #{_upblock_forward.4} parent=51 // pred_region
        _
      $region56: #{_upblock_forward.4} parent=51 // pred_fallthru
        _
      // Predicated region
      $region57: #{_upblock_forward.4} parent=51 // pred_check
        %p1463 = pneg %p244
      $region58: #{_upblock_forward.4} parent=51 // pred_check_branch
        %1465 = sbr.rel (%p1463) target = $region60
      $region59: #{_upblock_forward.4} parent=51 // pred_region
        _
      $region60: #{_upblock_forward.4} parent=51 // pred_fallthru
        _
      // Predicated region
      $region61: #{_upblock_forward.4} parent=51 // pred_check
        %p1466 = pneg %p270
      $region62: #{_upblock_forward.4} parent=51 // pred_check_branch
        %1468 = sbr.rel (%p1466) target = $region64
      $region63: #{_upblock_forward.4} parent=51 // pred_region
        _
      $region64: #{_upblock_forward.4} parent=51 // pred_fallthru
        _
    $region52: #{_upblock_forward.4} parent=5 // pred_fallthru
      _
    %p1469 = scmp.le.s32.totalorder 2, %s17
    // Predicated region
    $region65: #{_upblock_forward.4} parent=5 // pred_check
      %p1470 = pneg %p1469
    $region66: #{_upblock_forward.4} parent=5 // pred_check_branch
      %1472 = sbr.rel (%p1470) target = $region68
    $region67: #{_upblock_forward.4} parent=5 // pred_region
      %s1473 = ssub.s32 %s17, 2
      // Predicated region
      $region69: #{_upblock_forward.4} parent=67 // pred_check
        %p1474 = pneg %p224
      $region70: #{_upblock_forward.4} parent=67 // pred_check_branch
        %1476 = sbr.rel (%p1474) target = $region72
      $region71: #{_upblock_forward.4} parent=67 // pred_region
        %p1477 = scmp.lt.s32.totalorder %s23, 1
        %s1478 = scalar_select %p1477, %s23, 1
        %s1479 = smul.addr %s1478, 2
        %s1480 = smul.addr %s1479, 8
        %s1481 = scalar_lea.vmem %s8, %s1480
      $region72: #{_upblock_forward.4} parent=67 // pred_fallthru
        _
      // Predicated region
      $region73: #{_upblock_forward.4} parent=67 // pred_check
        %p1482 = pneg %p250
      $region74: #{_upblock_forward.4} parent=67 // pred_check_branch
        %1484 = sbr.rel (%p1482) target = $region76
      $region75: #{_upblock_forward.4} parent=67 // pred_region
        %p1485 = scmp.lt.s32.totalorder %s23, 1
        %s1486 = scalar_select %p1485, %s23, 1
        %s1487 = scalar_lea.vmem %s9, %s1486
      $region76: #{_upblock_forward.4} parent=67 // pred_fallthru
        _
      // Predicated region
      $region77: #{_upblock_forward.4} parent=67 // pred_check
        %p1488 = pneg %p276
      $region78: #{_upblock_forward.4} parent=67 // pred_check_branch
        %1490 = sbr.rel (%p1488) target = $region80
      $region79: #{_upblock_forward.4} parent=67 // pred_region
        %p1491 = scmp.lt.s32.totalorder %s23, 1
        %s1492 = scalar_select %p1491, %s23, 1
        %s1493 = scalar_lea.vmem %s10, %s1492
      $region80: #{_upblock_forward.4} parent=67 // pred_fallthru
        _
    $region68: #{_upblock_forward.4} parent=5 // pred_fallthru
      _
  $region6: #{_upblock_forward.4} parent=0 // loop_footer
    %s21 = sadd.s32 1, %s17
  $region7: #{_upblock_forward.4} parent=0 // loop_footer_branch
    %16 = sbr.rel target = $region3
  $region8: #{_upblock_forward.4} parent=0 // loop_exit
    _

// kernel: _upblock_forward.5
$region0: #{_upblock_forward.5}
  #allocation0 [shape = 'u32[]', space=smem, size = 0x4, offset = 0x4, fixed_abs, tag = 'smem constant byte address 0x4 - core index']
  #allocation1 [shape = 'u32[144,128]{1,0:T(1,128)}', space=vmem, size = 0x12000, scoped, tag = 'internal scratch']
  %s0 = inlined_call_operand.vmem [shape: f32[16,128], index: 0, kind: input, shape index: {}]
  %s1 = inlined_call_operand.vmem [shape: f32[1,128], index: 1, kind: input, shape index: {}]
  %s2 = inlined_call_operand.vmem [shape: f32[1,128], index: 2, kind: input, shape index: {}]
  %s3 = inlined_call_operand.vmem [shape: f32[16,128], index: 3, kind: output, shape index: {}]
  %s4 = sld [smem:[#allocation0]]
  $region22: #{_upblock_forward.5} parent=0
    _
  %s6 = ssub.s32 1, %s4
  %s7 = scalar_select 0, %s6, %s4
  // Predicated region
  $region2: #{_upblock_forward.5} parent=0 // pred_check
    _
  $region3: #{_upblock_forward.5} parent=0 // pred_check_branch
    %9 = sbr.rel (0) target = $region5
  $region4: #{_upblock_forward.5} parent=0 // pred_region
    _
  $region5: #{_upblock_forward.5} parent=0 // pred_fallthru
    _
  // Predicated region
  $region6: #{_upblock_forward.5} parent=0 // pred_check
    _
  $region7: #{_upblock_forward.5} parent=0 // pred_check_branch
    %11 = sbr.rel (0) target = $region9
  $region8: #{_upblock_forward.5} parent=0 // pred_region
    _
  $region9: #{_upblock_forward.5} parent=0 // pred_fallthru
    _
  // Predicated region
  $region10: #{_upblock_forward.5} parent=0 // pred_check
    _
  $region11: #{_upblock_forward.5} parent=0 // pred_check_branch
    %13 = sbr.rel (0) target = $region13
  $region12: #{_upblock_forward.5} parent=0 // pred_region
    _
  $region13: #{_upblock_forward.5} parent=0 // pred_fallthru
    _
  %v14 = vld [vmem:[%s0] sm:$0xff]
  %v15 = vld [vmem:[%s0 + $0x8] sm:$0xff]
  %v16 = vld [vmem:[%s1] sm:$0x1]
  %v18 = vlaneseq
  %v19 = vshrl.u32 %v18, 7
  %v20 = vsub.s32 0, %v19
  %v21 = vrot.slane %v16, %v20
  %v23 = vmul.f32 %v14, %v21
  %v24 = vmul.f32 %v15, %v21
  %v25 = vld [vmem:[%s2] sm:$0x1]
  %v27 = vlaneseq
  %v28 = vshrl.u32 %v27, 7
  %v29 = vsub.s32 0, %v28
  %v30 = vrot.slane %v25, %v29
  %v32 = vadd.f32 %v23, %v30
  %v33 = vadd.f32 %v24, %v30
  %v34 = vmax.f32 %v32, 0.0
  %v35 = vmax.f32 %v33, 0.0
  %36 = vst [vmem:[%s3] sm:$0xff] %v34
  %37 = vst [vmem:[%s3 + $0x8] sm:$0xff] %v35
  // Predicated region
  $region14: #{_upblock_forward.5} parent=0 // pred_check
    _
  $region15: #{_upblock_forward.5} parent=0 // pred_check_branch
    %39 = sbr.rel (0) target = $region17
  $region16: #{_upblock_forward.5} parent=0 // pred_region
    _
  $region17: #{_upblock_forward.5} parent=0 // pred_fallthru
    _
  // Predicated region
  $region18: #{_upblock_forward.5} parent=0 // pred_check
    _
  $region19: #{_upblock_forward.5} parent=0 // pred_check_branch
    %41 = sbr.rel (0) target = $region21
  $region20: #{_upblock_forward.5} parent=0 // pred_region
    _
  $region21: #{_upblock_forward.5} parent=0 // pred_fallthru
    _

</llo_original>
